<compile_context>
chip_gen: v5e
topology: v5e:2x2
jax: 0.10.0
libtpu: 0.0.40
codegen_flags: <defaults>
</compile_context>

<pallas_src>
import functools

import jax
import jax.numpy as jnp
from jax.experimental import pallas as pl
from jax.experimental.pallas import tpu as pltpu


def _round_up(x, m):
    return (x + m - 1) // m * m


def _choose_tile_rows(H, W, Cin_p, Cout_p, budget_bytes=24 * 1024 * 1024):
    """Pick TH (divisor of H) so the per-tile VMEM footprint stays ~<= budget.

    Rough per-output-row bytes: input tile + shifted views (~20*Cin_p B/px in bf16)
    + fused f32 matmul result and bf16 quadrant stores (~32*Cout_p B/px), x W px/row.
    """
    per_row = W * (20 * Cin_p + 32 * Cout_p)
    th = max(1, min(H, budget_bytes // max(per_row, 1)))
    while H % th:
        th -= 1
    return th


# ----- Kernel: ConvTranspose2d (parity decomposition, fused matmul) + partial stats ----

def _convt_stats_kernel(xm_ref, xh_ref, w_ref, yq_ref, sum_ref, ssq_ref,
                        *, TH, W, Cin_p, Cout_p):
    # xm_ref : (1, TH, W+1, Cin_p) bf16  -- input rows [t*TH, t*TH+TH), right-padded col
    # xh_ref : (1, 1,  W+1, Cin_p) bf16  -- halo row t*TH+TH (bottom zero row for last tile)
    # w_ref  : (4*Cin_p, 4*Cout_p) bf16  -- tap-stacked (K) and parity-fused (N) weights
    # yq_ref : (1, 2, 2, TH, W, Cout_p) bf16 -- conv output by output-pixel parity
    # sum_ref / ssq_ref : (1, 1, 1, Cout_p) f32 -- per-tile channel sums (BN partial stats)
    xm = xm_ref[0]                                        # (TH, W+1, Cin_p) bf16
    xh = xh_ref[0]                                        # (1,  W+1, Cin_p) bf16
    xd = jnp.concatenate([xm[1:], xh], axis=0)            # rows m+1: (TH, W+1, Cin_p)

    M = TH * W
    # Shifted bf16 views (no f32 upcast; the right/bottom pad makes these plain slices).
    f00 = xm[:, :W, :].reshape(M, Cin_p)                  # X[m,   q  ]
    f01 = xm[:, 1:, :].reshape(M, Cin_p)                  # X[m,   q+1]
    f10 = xd[:, :W, :].reshape(M, Cin_p)                  # X[m+1, q  ]
    f11 = xd[:, 1:, :].reshape(M, Cin_p)                  # X[m+1, q+1]
    F = jnp.concatenate([f00, f01, f10, f11], axis=-1)    # (M, 4*Cin_p) bf16

    # One fused MXU matmul for all four output parities (f32 accumulation).
    #   O[2m,   2q  ] = X[m,q]·W[1,1]
    #   O[2m,   2q+1] = X[m,q]·W[1,2] + X[m,q+1]·W[1,0]
    #   O[2m+1, 2q  ] = X[m,q]·W[2,1] + X[m+1,q]·W[0,1]
    #   O[2m+1, 2q+1] = X[m,q]·W[2,2] + X[m,q+1]·W[2,0] + X[m+1,q]·W[0,2] + X[m+1,q+1]·W[0,0]
    # (ConvTranspose bias omitted: training-mode BatchNorm absorbs it exactly.)
    Y = jnp.dot(F, w_ref[...], preferred_element_type=jnp.float32)   # (M, 4*Cout_p) f32

    # Per-parity: reduce stats immediately, downcast and store, then move on.
    ssum = jnp.zeros((1, Cout_p), jnp.float32)
    ssq = jnp.zeros((1, Cout_p), jnp.float32)
    for q in range(4):
        yq = Y[:, q * Cout_p:(q + 1) * Cout_p]                        # (M, Cout_p) f32
        ssum = ssum + jnp.sum(yq, axis=0, keepdims=True)
        ssq = ssq + jnp.sum(yq * yq, axis=0, keepdims=True)
        yq_ref[0, q // 2, q % 2] = yq.reshape(TH, W, Cout_p).astype(jnp.bfloat16)
    sum_ref[0, 0] = ssum
    ssq_ref[0, 0] = ssq


# ----- Wrapper --------------------------------------------------------------------------

def conv_bn_relu_up(x_nchw, w, b, gamma, beta, eps=1e-5):
    """x_nchw: (N, Cin, H, W); w: (Cin, Cout, 3, 3) [PyTorch ConvTranspose2d layout];
    b/gamma/beta: (Cout,). Returns (N, Cout, 2H, 2W) float32 (NCHW), matching the module
    (training-mode BatchNorm forward)."""
    del b  # exactly absorbed by training-mode BatchNorm (mean shift / shift-invariant var)
    N, Cin, H, W = x_nchw.shape
    Cout = w.shape[1]
    Cin_p = _round_up(Cin, 32)          # K-blocks 128-aligned once the 4 taps are stacked
    Cout_p = _round_up(Cout, 128)       # lane-dense output stores

    # NHWC bf16, channel pad, +1 bottom row / right column of zeros.
    x = jnp.transpose(x_nchw, (0, 2, 3, 1)).astype(jnp.bfloat16)
    x = jnp.pad(x, ((0, 0), (0, 1), (0, 1), (0, Cin_p - Cin)))       # (N, H+1, W+1, Cin_p)

    # Tap-stacked (K) + parity-fused (N) weights: (4*Cin_p, 4*Cout_p).
    # K-blocks line up with F = [X[m,q], X[m,q+1], X[m+1,q], X[m+1,q+1]];
    # N-blocks are the four output parities (ee, eo, oe, oo).
    wt = jnp.transpose(w, (2, 3, 0, 1)).astype(jnp.float32)          # (3, 3, Cin, Cout)
    wt = jnp.pad(wt, ((0, 0), (0, 0), (0, Cin_p - Cin), (0, Cout_p - Cout)))
    zero = jnp.zeros((Cin_p, Cout_p), jnp.float32)
    cols = [
        jnp.concatenate([wt[1, 1], zero,     zero,     zero],     axis=0),  # O[2m,  2q  ]
        jnp.concatenate([wt[1, 2], wt[1, 0], zero,     zero],     axis=0),  # O[2m,  2q+1]
        jnp.concatenate([wt[2, 1], zero,     wt[0, 1], zero],     axis=0),  # O[2m+1,2q  ]
        jnp.concatenate([wt[2, 2], wt[2, 0], wt[0, 2], wt[0, 0]], axis=0),  # O[2m+1,2q+1]
    ]
    w_fused = jnp.concatenate(cols, axis=1).astype(jnp.bfloat16)     # (4*Cin_p, 4*Cout_p)

    TH = _choose_tile_rows(H, W, Cin_p, Cout_p)
    n_th = H // TH

    kernel1 = functools.partial(_convt_stats_kernel, TH=TH, W=W, Cin_p=Cin_p, Cout_p=Cout_p)
    yq, psum, psumsq = pl.pallas_call(
        kernel1,
        grid=(N, n_th),
        in_specs=[
            # main rows [t*TH, t*TH+TH)
            pl.BlockSpec((1, TH, W + 1, Cin_p), lambda n, t: (n, t, 0, 0)),
            # one halo row t*TH+TH (block size 1 along H -> block index == row index)
            pl.BlockSpec((1, 1, W + 1, Cin_p), lambda n, t: (n, (t + 1) * TH, 0, 0)),
            # fused weights, resident across the grid
            pl.BlockSpec((4 * Cin_p, 4 * Cout_p), lambda n, t: (0, 0)),
        ],
        out_specs=[
            pl.BlockSpec((1, 2, 2, TH, W, Cout_p), lambda n, t: (n, 0, 0, t, 0, 0)),
            pl.BlockSpec((1, 1, 1, Cout_p), lambda n, t: (n, t, 0, 0)),
            pl.BlockSpec((1, 1, 1, Cout_p), lambda n, t: (n, t, 0, 0)),
        ],
        out_shape=[
            jax.ShapeDtypeStruct((N, 2, 2, H, W, Cout_p), jnp.bfloat16),
            jax.ShapeDtypeStruct((N, n_th, 1, Cout_p), jnp.float32),
            jax.ShapeDtypeStruct((N, n_th, 1, Cout_p), jnp.float32),
        ],
        compiler_params=pltpu.CompilerParams(
            dimension_semantics=("parallel", "parallel"),
            vmem_limit_bytes=48 * 1024 * 1024),   # headroom under v7x's 64 MiB physical
    )(x, x, w_fused)

    # BatchNorm batch statistics (training-mode forward, biased variance) -> scale/shift.
    count = float(N * (2 * H) * (2 * W))
    mean = jnp.sum(psum, axis=(0, 1, 2)) / count                      # (Cout_p,)
    var = jnp.sum(psumsq, axis=(0, 1, 2)) / count - mean * mean
    var = jnp.maximum(var, 0.0)                                       # guard f32 roundoff
    g = jnp.pad(gamma.astype(jnp.float32), (0, Cout_p - Cout))
    be = jnp.pad(beta.astype(jnp.float32), (0, Cout_p - Cout))
    scale = g * jax.lax.rsqrt(var + eps)
    shift = be - mean * scale

    # BN scale/shift + ReLU as a jnp epilogue fused by XLA with the SINGLE layout pass
    # (quadrant interleave + NHWC->NCHW): one HBM read (bf16) + one write (f32) instead
    # of a separate BN kernel plus a standalone transpose (perf review).
    # yq[n, ph, pw, m, q, c] == conv_out[n, 2m+ph, 2q+pw, c]
    o = jnp.maximum(yq[..., :Cout].astype(jnp.float32) * scale[:Cout] + shift[:Cout], 0.0)
    out = jnp.transpose(o, (0, 5, 3, 1, 4, 2)).reshape(N, Cout, 2 * H, 2 * W)
    return out


# ----- Pure-JAX reference (for sanity check) --------------------------------------------

def _reference(x_nchw, w, b, gamma, beta, eps=1e-5):
    # ConvTranspose2d(s=2, p=1, op=1, k=3) == conv(dilate(x,2), flip(w), pad=(1,2))
    wf = jnp.transpose(jnp.flip(w, (2, 3)), (1, 0, 2, 3))             # (Cout, Cin, 3, 3)
    y = jax.lax.conv_general_dilated(
        x_nchw.astype(jnp.float32), wf.astype(jnp.float32),
        window_strides=(1, 1), padding=((1, 2), (1, 2)), lhs_dilation=(2, 2),
        dimension_numbers=("NCHW", "OIHW", "NCHW"))
    y = y + b.reshape(1, -1, 1, 1)
    mean = jnp.mean(y, axis=(0, 2, 3), keepdims=True)
    var = jnp.mean((y - mean) ** 2, axis=(0, 2, 3), keepdims=True)
    y = (y - mean) * jax.lax.rsqrt(var + eps) * gamma.reshape(1, -1, 1, 1) + beta.reshape(1, -1, 1, 1)
    return jnp.maximum(y, 0.0)


if __name__ == "__main__":
    N, Cin, Cout, H, W = 2, 4, 8, 16, 16

    key = jax.random.PRNGKey(0)
    kx, kw, kb, kg, kbeta = jax.random.split(key, 5)
    x = jax.random.normal(kx, (N, Cin, H, W), jnp.float32)
    w = jax.random.normal(kw, (Cin, Cout, 3, 3), jnp.float32) * 0.1    # ConvTranspose2d weight
    b = jax.random.normal(kb, (Cout,), jnp.float32) * 0.1              # ConvTranspose2d bias
    gamma = 1.0 + 0.1 * jax.random.normal(kg, (Cout,), jnp.float32)    # BN weight
    beta = 0.1 * jax.random.normal(kbeta, (Cout,), jnp.float32)        # BN bias

    # Pre-round operands to bf16 so the f32 reference and the bf16-MXU kernel see the
    # same operand values; the remaining difference is bf16 intermediate rounding.
    x = x.astype(jnp.bfloat16).astype(jnp.float32)
    w = w.astype(jnp.bfloat16).astype(jnp.float32)

    out = jax.block_until_ready(conv_bn_relu_up(x, w, b, gamma, beta))
    ref = jax.block_until_ready(_reference(x, w, b, gamma, beta))

    assert out.shape == (N, Cout, 2 * H, 2 * W), out.shape
    err = float(jnp.max(jnp.abs(out - ref)))
    assert jnp.allclose(out, ref, atol=5e-2, rtol=5e-2), err

    print("KERNEL_OK")
</pallas_src>

<mosaic_0001>
module attributes {stable_mosaic.version = 11 : i64} {
  func.func @_convt_stats_kernel(%arg0: i32, %arg1: i32, %arg2: memref<1x16x17x32xbf16, #tpu.memory_space<vmem>>, %arg3: memref<1x1x17x32xbf16, #tpu.memory_space<vmem>>, %arg4: memref<128x512xbf16, #tpu.memory_space<vmem>>, %arg5: memref<1x2x2x16x16x128xbf16, #tpu.memory_space<vmem>>, %arg6: memref<1x1x1x128xf32, #tpu.memory_space<vmem>>, %arg7: memref<1x1x1x128xf32, #tpu.memory_space<vmem>>) attributes {dimension_semantics = [#tpu.dimension_semantics<parallel>, #tpu.dimension_semantics<parallel>], iteration_bounds = array<i64: 2, 1>, scalar_prefetch = 0 : i64, scratch_operands = 0 : i64, tpu.core_type = #tpu.core_type<tc>, window_params = [{transform_indices = @transform_0, window_bounds = array<i64: 1, 16, 17, 32>}, {transform_indices = @transform_1, window_bounds = array<i64: 1, 1, 17, 32>}, {pipeline_mode = #tpu.pipeline_mode<synchronous>, transform_indices = @transform_2, window_bounds = array<i64: 128, 512>}, {transform_indices = @transform_3, window_bounds = array<i64: 1, 2, 2, 16, 16, 128>}, {transform_indices = @transform_4, window_bounds = array<i64: 1, 1, 1, 128>}, {transform_indices = @transform_5, window_bounds = array<i64: 1, 1, 1, 128>}]} {
    %c0 = arith.constant 0 : index
    %c0_0 = arith.constant 0 : index
    %c0_1 = arith.constant 0 : index
    %c0_2 = arith.constant 0 : index
    %0 = vector.load %arg2[%c0, %c0_0, %c0_1, %c0_2] : memref<1x16x17x32xbf16, #tpu.memory_space<vmem>>, vector<1x16x17x32xbf16>
    %1 = vector.shape_cast %0 : vector<1x16x17x32xbf16> to vector<16x17x32xbf16>
    %c0_3 = arith.constant 0 : index
    %c0_4 = arith.constant 0 : index
    %c0_5 = arith.constant 0 : index
    %c0_6 = arith.constant 0 : index
    %2 = vector.load %arg3[%c0_3, %c0_4, %c0_5, %c0_6] : memref<1x1x17x32xbf16, #tpu.memory_space<vmem>>, vector<1x1x17x32xbf16>
    %3 = vector.shape_cast %2 : vector<1x1x17x32xbf16> to vector<1x17x32xbf16>
    %4 = vector.extract_strided_slice %1 {offsets = [1, 0, 0], sizes = [15, 17, 32], strides = [1, 1, 1]} : vector<16x17x32xbf16> to vector<15x17x32xbf16>
    %5 = tpu.concatenate %4, %3 in 0 : vector<15x17x32xbf16>, vector<1x17x32xbf16> -> vector<16x17x32xbf16>
    %6 = vector.extract_strided_slice %1 {offsets = [0, 0, 0], sizes = [16, 16, 32], strides = [1, 1, 1]} : vector<16x17x32xbf16> to vector<16x16x32xbf16>
    %7 = vector.shape_cast %6 : vector<16x16x32xbf16> to vector<256x32xbf16>
    %8 = vector.extract_strided_slice %1 {offsets = [0, 1, 0], sizes = [16, 16, 32], strides = [1, 1, 1]} : vector<16x17x32xbf16> to vector<16x16x32xbf16>
    %9 = vector.shape_cast %8 : vector<16x16x32xbf16> to vector<256x32xbf16>
    %10 = vector.extract_strided_slice %5 {offsets = [0, 0, 0], sizes = [16, 16, 32], strides = [1, 1, 1]} : vector<16x17x32xbf16> to vector<16x16x32xbf16>
    %11 = vector.shape_cast %10 : vector<16x16x32xbf16> to vector<256x32xbf16>
    %12 = vector.extract_strided_slice %5 {offsets = [0, 1, 0], sizes = [16, 16, 32], strides = [1, 1, 1]} : vector<16x17x32xbf16> to vector<16x16x32xbf16>
    %13 = vector.shape_cast %12 : vector<16x16x32xbf16> to vector<256x32xbf16>
    %14 = tpu.concatenate %7, %9, %11, %13 in 1 : vector<256x32xbf16>, vector<256x32xbf16>, vector<256x32xbf16>, vector<256x32xbf16> -> vector<256x128xbf16>
    %c0_7 = arith.constant 0 : index
    %c0_8 = arith.constant 0 : index
    %15 = vector.load %arg4[%c0_7, %c0_8] : memref<128x512xbf16, #tpu.memory_space<vmem>>, vector<128x512xbf16>
    %cst = arith.constant dense<0.000000e+00> : vector<256x512xf32>
    %16 = tpu.matmul %14, %15, %cst {dimension_numbers = #tpu.dot_dimension_numbers<[1], [0], [0], [1], [0, 0, 1, 1], [], []>} : vector<256x128xbf16>, vector<128x512xbf16>, vector<256x512xf32> -> vector<256x512xf32>
    %cst_9 = arith.constant 0.000000e+00 : f32
    %17 = vector.broadcast %cst_9 : f32 to vector<1x128xf32>
    %cst_10 = arith.constant 0.000000e+00 : f32
    %18 = vector.broadcast %cst_10 : f32 to vector<1x128xf32>
    %19 = vector.extract_strided_slice %16 {offsets = [0, 0], sizes = [256, 128], strides = [1, 1]} : vector<256x512xf32> to vector<256x128xf32>
    %cst_11 = arith.constant dense<0.000000e+00> : vector<128xf32>
    %20 = vector.multi_reduction <add>, %19, %cst_11 [0] : vector<256x128xf32> to vector<128xf32>
    %21 = vector.shape_cast %20 : vector<128xf32> to vector<1x128xf32>
    %22 = arith.addf %17, %21 : vector<1x128xf32>
    %23 = arith.mulf %19, %19 : vector<256x128xf32>
    %cst_12 = arith.constant dense<0.000000e+00> : vector<128xf32>
    %24 = vector.multi_reduction <add>, %23, %cst_12 [0] : vector<256x128xf32> to vector<128xf32>
    %25 = vector.shape_cast %24 : vector<128xf32> to vector<1x128xf32>
    %26 = arith.addf %18, %25 : vector<1x128xf32>
    %27 = vector.shape_cast %19 : vector<256x128xf32> to vector<16x16x128xf32>
    %28 = arith.truncf %27 : vector<16x16x128xf32> to vector<16x16x128xbf16>
    %c0_13 = arith.constant 0 : index
    %c0_14 = arith.constant 0 : index
    %c0_15 = arith.constant 0 : index
    %c0_16 = arith.constant 0 : index
    %c0_17 = arith.constant 0 : index
    %c0_18 = arith.constant 0 : index
    %29 = vector.load %arg5[%c0_13, %c0_14, %c0_15, %c0_16, %c0_17, %c0_18] : memref<1x2x2x16x16x128xbf16, #tpu.memory_space<vmem>>, vector<1x1x1x16x16x128xbf16>
    %30 = vector.shape_cast %29 : vector<1x1x1x16x16x128xbf16> to vector<16x16x128xbf16>
    %31 = vector.shape_cast %28 : vector<16x16x128xbf16> to vector<1x1x1x16x16x128xbf16>
    tpu.vector_store %arg5[%c0_13, %c0_14, %c0_15, %c0_16, %c0_17, %c0_18], %31 {strides = array<i32>} : memref<1x2x2x16x16x128xbf16, #tpu.memory_space<vmem>>, vector<1x1x1x16x16x128xbf16>,
    %32 = vector.extract_strided_slice %16 {offsets = [0, 128], sizes = [256, 128], strides = [1, 1]} : vector<256x512xf32> to vector<256x128xf32>
    %cst_19 = arith.constant dense<0.000000e+00> : vector<128xf32>
    %33 = vector.multi_reduction <add>, %32, %cst_19 [0] : vector<256x128xf32> to vector<128xf32>
    %34 = vector.shape_cast %33 : vector<128xf32> to vector<1x128xf32>
    %35 = arith.addf %22, %34 : vector<1x128xf32>
    %36 = arith.mulf %32, %32 : vector<256x128xf32>
    %cst_20 = arith.constant dense<0.000000e+00> : vector<128xf32>
    %37 = vector.multi_reduction <add>, %36, %cst_20 [0] : vector<256x128xf32> to vector<128xf32>
    %38 = vector.shape_cast %37 : vector<128xf32> to vector<1x128xf32>
    %39 = arith.addf %26, %38 : vector<1x128xf32>
    %40 = vector.shape_cast %32 : vector<256x128xf32> to vector<16x16x128xf32>
    %41 = arith.truncf %40 : vector<16x16x128xf32> to vector<16x16x128xbf16>
    %c0_21 = arith.constant 0 : index
    %c0_22 = arith.constant 0 : index
    %c1 = arith.constant 1 : index
    %c0_23 = arith.constant 0 : index
    %c0_24 = arith.constant 0 : index
    %c0_25 = arith.constant 0 : index
    %42 = vector.load %arg5[%c0_21, %c0_22, %c1, %c0_23, %c0_24, %c0_25] : memref<1x2x2x16x16x128xbf16, #tpu.memory_space<vmem>>, vector<1x1x1x16x16x128xbf16>
    %43 = vector.shape_cast %42 : vector<1x1x1x16x16x128xbf16> to vector<16x16x128xbf16>
    %44 = vector.shape_cast %41 : vector<16x16x128xbf16> to vector<1x1x1x16x16x128xbf16>
    tpu.vector_store %arg5[%c0_21, %c0_22, %c1, %c0_23, %c0_24, %c0_25], %44 {strides = array<i32>} : memref<1x2x2x16x16x128xbf16, #tpu.memory_space<vmem>>, vector<1x1x1x16x16x128xbf16>,
    %45 = vector.extract_strided_slice %16 {offsets = [0, 256], sizes = [256, 128], strides = [1, 1]} : vector<256x512xf32> to vector<256x128xf32>
    %cst_26 = arith.constant dense<0.000000e+00> : vector<128xf32>
    %46 = vector.multi_reduction <add>, %45, %cst_26 [0] : vector<256x128xf32> to vector<128xf32>
    %47 = vector.shape_cast %46 : vector<128xf32> to vector<1x128xf32>
    %48 = arith.addf %35, %47 : vector<1x128xf32>
    %49 = arith.mulf %45, %45 : vector<256x128xf32>
    %cst_27 = arith.constant dense<0.000000e+00> : vector<128xf32>
    %50 = vector.multi_reduction <add>, %49, %cst_27 [0] : vector<256x128xf32> to vector<128xf32>
    %51 = vector.shape_cast %50 : vector<128xf32> to vector<1x128xf32>
    %52 = arith.addf %39, %51 : vector<1x128xf32>
    %53 = vector.shape_cast %45 : vector<256x128xf32> to vector<16x16x128xf32>
    %54 = arith.truncf %53 : vector<16x16x128xf32> to vector<16x16x128xbf16>
    %c0_28 = arith.constant 0 : index
    %c1_29 = arith.constant 1 : index
    %c0_30 = arith.constant 0 : index
    %c0_31 = arith.constant 0 : index
    %c0_32 = arith.constant 0 : index
    %c0_33 = arith.constant 0 : index
    %55 = vector.load %arg5[%c0_28, %c1_29, %c0_30, %c0_31, %c0_32, %c0_33] : memref<1x2x2x16x16x128xbf16, #tpu.memory_space<vmem>>, vector<1x1x1x16x16x128xbf16>
    %56 = vector.shape_cast %55 : vector<1x1x1x16x16x128xbf16> to vector<16x16x128xbf16>
    %57 = vector.shape_cast %54 : vector<16x16x128xbf16> to vector<1x1x1x16x16x128xbf16>
    tpu.vector_store %arg5[%c0_28, %c1_29, %c0_30, %c0_31, %c0_32, %c0_33], %57 {strides = array<i32>} : memref<1x2x2x16x16x128xbf16, #tpu.memory_space<vmem>>, vector<1x1x1x16x16x128xbf16>,
    %58 = vector.extract_strided_slice %16 {offsets = [0, 384], sizes = [256, 128], strides = [1, 1]} : vector<256x512xf32> to vector<256x128xf32>
    %cst_34 = arith.constant dense<0.000000e+00> : vector<128xf32>
    %59 = vector.multi_reduction <add>, %58, %cst_34 [0] : vector<256x128xf32> to vector<128xf32>
    %60 = vector.shape_cast %59 : vector<128xf32> to vector<1x128xf32>
    %61 = arith.addf %48, %60 : vector<1x128xf32>
    %62 = arith.mulf %58, %58 : vector<256x128xf32>
    %cst_35 = arith.constant dense<0.000000e+00> : vector<128xf32>
    %63 = vector.multi_reduction <add>, %62, %cst_35 [0] : vector<256x128xf32> to vector<128xf32>
    %64 = vector.shape_cast %63 : vector<128xf32> to vector<1x128xf32>
    %65 = arith.addf %52, %64 : vector<1x128xf32>
    %66 = vector.shape_cast %58 : vector<256x128xf32> to vector<16x16x128xf32>
    %67 = arith.truncf %66 : vector<16x16x128xf32> to vector<16x16x128xbf16>
    %c0_36 = arith.constant 0 : index
    %c1_37 = arith.constant 1 : index
    %c1_38 = arith.constant 1 : index
    %c0_39 = arith.constant 0 : index
    %c0_40 = arith.constant 0 : index
    %c0_41 = arith.constant 0 : index
    %68 = vector.load %arg5[%c0_36, %c1_37, %c1_38, %c0_39, %c0_40, %c0_41] : memref<1x2x2x16x16x128xbf16, #tpu.memory_space<vmem>>, vector<1x1x1x16x16x128xbf16>
    %69 = vector.shape_cast %68 : vector<1x1x1x16x16x128xbf16> to vector<16x16x128xbf16>
    %70 = vector.shape_cast %67 : vector<16x16x128xbf16> to vector<1x1x1x16x16x128xbf16>
    tpu.vector_store %arg5[%c0_36, %c1_37, %c1_38, %c0_39, %c0_40, %c0_41], %70 {strides = array<i32>} : memref<1x2x2x16x16x128xbf16, #tpu.memory_space<vmem>>, vector<1x1x1x16x16x128xbf16>,
    %c0_42 = arith.constant 0 : index
    %c0_43 = arith.constant 0 : index
    %c0_44 = arith.constant 0 : index
    %c0_45 = arith.constant 0 : index
    %71 = vector.load %arg6[%c0_42, %c0_43, %c0_44, %c0_45] : memref<1x1x1x128xf32, #tpu.memory_space<vmem>>, vector<1x1x1x128xf32>
    %72 = vector.shape_cast %71 : vector<1x1x1x128xf32> to vector<1x128xf32>
    %73 = vector.shape_cast %61 : vector<1x128xf32> to vector<1x1x1x128xf32>
    tpu.vector_store %arg6[%c0_42, %c0_43, %c0_44, %c0_45], %73 {strides = array<i32>} : memref<1x1x1x128xf32, #tpu.memory_space<vmem>>, vector<1x1x1x128xf32>,
    %c0_46 = arith.constant 0 : index
    %c0_47 = arith.constant 0 : index
    %c0_48 = arith.constant 0 : index
    %c0_49 = arith.constant 0 : index
    %74 = vector.load %arg7[%c0_46, %c0_47, %c0_48, %c0_49] : memref<1x1x1x128xf32, #tpu.memory_space<vmem>>, vector<1x1x1x128xf32>
    %75 = vector.shape_cast %74 : vector<1x1x1x128xf32> to vector<1x128xf32>
    %76 = vector.shape_cast %65 : vector<1x128xf32> to vector<1x1x1x128xf32>
    tpu.vector_store %arg7[%c0_46, %c0_47, %c0_48, %c0_49], %76 {strides = array<i32>} : memref<1x1x1x128xf32, #tpu.memory_space<vmem>>, vector<1x1x1x128xf32>,
    return
  }
  func.func @transform_0(%arg0: i32, %arg1: i32) -> (i32, i32, i32, i32) {
    %c0_i32 = arith.constant 0 : i32
    %c0_i32_0 = arith.constant 0 : i32
    %c0_i32_1 = arith.constant 0 : i32
    return %arg0, %arg1, %c0_i32, %c0_i32_0 : i32, i32, i32, i32
  }
  func.func @transform_1(%arg0: i32, %arg1: i32) -> (i32, i32, i32, i32) {
    %c1_i32 = arith.constant 1 : i32
    %0 = arith.addi %arg1, %c1_i32 : i32
    %c16_i32 = arith.constant 16 : i32
    %1 = arith.muli %0, %c16_i32 : i32
    %c0_i32 = arith.constant 0 : i32
    %c0_i32_0 = arith.constant 0 : i32
    %c0_i32_1 = arith.constant 0 : i32
    return %arg0, %1, %c0_i32, %c0_i32_0 : i32, i32, i32, i32
  }
  func.func @transform_2(%arg0: i32, %arg1: i32) -> (i32, i32) {
    %c0_i32 = arith.constant 0 : i32
    %c0_i32_0 = arith.constant 0 : i32
    %c0_i32_1 = arith.constant 0 : i32
    return %c0_i32, %c0_i32_0 : i32, i32
  }
  func.func @transform_3(%arg0: i32, %arg1: i32) -> (i32, i32, i32, i32, i32, i32) {
    %c0_i32 = arith.constant 0 : i32
    %c0_i32_0 = arith.constant 0 : i32
    %c0_i32_1 = arith.constant 0 : i32
    %c0_i32_2 = arith.constant 0 : i32
    %c0_i32_3 = arith.constant 0 : i32
    return %arg0, %c0_i32, %c0_i32_0, %arg1, %c0_i32_1, %c0_i32_2 : i32, i32, i32, i32, i32, i32
  }
  func.func @transform_4(%arg0: i32, %arg1: i32) -> (i32, i32, i32, i32) {
    %c0_i32 = arith.constant 0 : i32
    %c0_i32_0 = arith.constant 0 : i32
    %c0_i32_1 = arith.constant 0 : i32
    return %arg0, %arg1, %c0_i32, %c0_i32_0 : i32, i32, i32, i32
  }
  func.func @transform_5(%arg0: i32, %arg1: i32) -> (i32, i32, i32, i32) {
    %c0_i32 = arith.constant 0 : i32
    %c0_i32_0 = arith.constant 0 : i32
    %c0_i32_1 = arith.constant 0 : i32
    return %arg0, %arg1, %c0_i32, %c0_i32_0 : i32, i32, i32, i32
  }
}

</mosaic_0001>

<llo_original>
// kernel: tpu_custom_call.1
$region0: #{tpu_custom_call.1}
  #allocation0 [shape = 'u32[]', space=smem, size = 0x4, offset = 0x4, fixed_abs, tag = 'smem constant byte address 0x4 - core index']
  #allocation1 [shape = 'u32[72,128]{1,0:T(1,128)}', space=vmem, size = 0x9000, scoped, tag = 'internal scratch']
  %s0 = inlined_call_operand.vmem [shape: bf16[2,17,17,32], index: 0, kind: input, shape index: {}]
  %s1 = inlined_call_operand.vmem [shape: bf16[2,17,17,32], index: 1, kind: input, shape index: {}]
  %s2 = inlined_call_operand.vmem [shape: bf16[128,512], index: 2, kind: input, shape index: {}]
  %s3 = inlined_call_operand.hbm [shape: bf16[2,2,2,16,16,128], index: 3, kind: output, shape index: {0}]
  %s4 = inlined_call_operand.hbm [shape: f32[2,1,1,128], index: 4, kind: output, shape index: {1}]
  %s5 = inlined_call_operand.hbm [shape: f32[2,1,1,128], index: 5, kind: output, shape index: {2}]
  %6 = xla_tuple %s3, %s4, %s5
  %s7 = sld [smem:[#allocation0]]
  $region61: #{tpu_custom_call.1} parent=0
    _
  %s9 = ssub.s32 1, %s7
  %s10 = scalar_select 0, %s9, %s7
  $region1: #{tpu_custom_call.1} parent=0
    #allocation2 [shape = 'u8[524288]{0}', space=vmem, size = 0x80000, scoped, tag = 'output window, operand 0']
    #allocation3 [shape = 's32[2]{0}', space=sflag, size = 0x8, scoped, tag = 'scoped memory for tpu_custom_call.1']
    #allocation4 [shape = 'u8[1024]{0}', space=vmem, size = 0x400, scoped, tag = 'output window, operand 1']
    #allocation5 [shape = 's32[2]{0}', space=sflag, size = 0x8, scoped, tag = 'scoped memory for tpu_custom_call.1']
    #allocation6 [shape = 'u8[1024]{0}', space=vmem, size = 0x400, scoped, tag = 'output window, operand 2']
    %11 = vsyncpa [#allocation3], 0
    %s12 = scalar_lea.sflag [#allocation3], 1
    %13 = vsyncpa %s12, 0
    %14 = vsyncpa [#allocation5], 0
    %s15 = scalar_lea.sflag [#allocation5], 1
    %16 = vsyncpa %s15, 0
    loop: start=0, step=1, limit=4
    $region2: #{tpu_custom_call.1} parent=1 // loop_pre_header
      _
    $region3: #{tpu_custom_call.1} parent=1 // loop_header
      %s18 = sphi 0, %s22
      %p19 = scmp.ge.s32.totalorder %s18, 4
      %s25 = sphi 0, %s37
      %s26 = sphi 0, %s33
      %s27 = sphi 0, %s25
      %s28 = sphi 0, %s26
      %s29 = sphi 0, %s27
      %s30 = sphi 0, %s28
      %s42 = sphi 0, %s44
      %s45 = sphi 0, %s42
      %s46 = sphi 0, %s45
      %s62 = sphi 0, %s46
      %s74 = sphi 0, %s76
      %s77 = sphi 0, %s74
      %s78 = sphi 0, %s77
      %s94 = sphi 0, %s78
      %s98 = sphi 0, %s98
      %s100 = sphi 0, %s98
      %s101 = sphi 0, %s100
      %s115 = sphi 0, %s101
      %s123 = sphi 0, %s125
      %s126 = sphi 0, %s123
      %s127 = sphi 0, %s126
      %s143 = sphi 0, %s127
      %s151 = sphi 0, %s153
      %s154 = sphi 0, %s151
      %s155 = sphi 0, %s154
      %s171 = sphi 0, %s155
      %s179 = sphi 0, %s181
      %s182 = sphi 0, %s179
      %s183 = sphi 0, %s182
      %s199 = sphi 0, %s183
    $region4: #{tpu_custom_call.1} parent=1 // loop_header_branch
      %21 = sbr.rel (%p19) target = $region8
    $region5: #{tpu_custom_call.1} parent=1 // loop_body
      %s23 = ssub.s32 %s18, 1
      %s24 = ssub.s32 %s18, 2
      %s31 = sadd.s32 1, %s26
      %p32 = scmp.ge.s32.totalorder %s31, 1
      %s33 = scalar_select %p32, 0, %s31
      %s34 = sadd.s32 1, %s25
      %s35 = scalar_select %p32, %s34, %s25
      %p36 = scmp.ge.s32.totalorder %s35, 2
      %s37 = scalar_select %p36, 0, %s35
      %s38 = ssub.s32 %s25, %s37
      %s39 = ssub.s32 %s26, %s33
      %s40 = sor.u32 %s38, %s39
      %p41 = scmp.eq.s32.totalorder %s40, 0
      %s43 = sadd.s32 %s42, 1
      %s44 = scalar_select %p41, %s42, %s43
      %p47 = pneg %p41
      %p48 = scmp.eq.s32.totalorder %s18, 1
      %p49 = por %p47, %p48
      %p50 = scmp.ne.s32.totalorder %s42, %s45
      %p51 = scmp.eq.s32.totalorder %s18, 0
      %p52 = por %p50, %p51
      %p53 = scmp.ne.s32.totalorder %s42, %s45
      %p54 = scmp.eq.s32.totalorder %s23, 1
      %p55 = por %p53, %p54
      %p56 = scmp.ne.s32.totalorder %s45, %s46
      %p57 = scmp.eq.s32.totalorder %s23, 0
      %p58 = por %p56, %p57
      %p59 = scmp.ne.s32.totalorder %s45, %s46
      %p60 = scmp.eq.s32.totalorder %s24, 1
      %p61 = por %p59, %p60
      %p63 = scmp.ne.s32.totalorder %s46, %s62
      %p64 = scmp.eq.s32.totalorder %s24, 0
      %p65 = por %p63, %p64
      %s66 = sadd.s32 %s26, 1
      %s67 = smul.u32 %s66, 16
      %s68 = sadd.s32 %s33, 1
      %s69 = smul.u32 %s68, 16
      %s70 = ssub.s32 %s25, %s37
      %s71 = ssub.s32 %s67, %s69
      %s72 = sor.u32 %s70, %s71
      %p73 = scmp.eq.s32.totalorder %s72, 0
      %s75 = sadd.s32 %s74, 1
      %s76 = scalar_select %p73, %s74, %s75
      %p79 = pneg %p73
      %p80 = scmp.eq.s32.totalorder %s18, 1
      %p81 = por %p79, %p80
      %p82 = scmp.ne.s32.totalorder %s74, %s77
      %p83 = scmp.eq.s32.totalorder %s18, 0
      %p84 = por %p82, %p83
      %p85 = scmp.ne.s32.totalorder %s74, %s77
      %p86 = scmp.eq.s32.totalorder %s23, 1
      %p87 = por %p85, %p86
      %p88 = scmp.ne.s32.totalorder %s77, %s78
      %p89 = scmp.eq.s32.totalorder %s23, 0
      %p90 = por %p88, %p89
      %p91 = scmp.ne.s32.totalorder %s77, %s78
      %p92 = scmp.eq.s32.totalorder %s24, 1
      %p93 = por %p91, %p92
      %p95 = scmp.ne.s32.totalorder %s78, %s94
      %p96 = scmp.eq.s32.totalorder %s24, 0
      %p97 = por %p95, %p96
      %s99 = sadd.s32 %s98, 1
      %p102 = scmp.eq.s32.totalorder %s18, 1
      %p103 = scmp.ne.s32.totalorder %s98, %s100
      %p104 = scmp.eq.s32.totalorder %s18, 0
      %p105 = por %p103, %p104
      %p106 = scmp.ne.s32.totalorder %s98, %s100
      %p107 = scmp.eq.s32.totalorder %s23, 1
      %p108 = por %p106, %p107
      %p109 = scmp.ne.s32.totalorder %s100, %s101
      %p110 = scmp.eq.s32.totalorder %s23, 0
      %p111 = por %p109, %p110
      %p112 = scmp.ne.s32.totalorder %s100, %s101
      %p113 = scmp.eq.s32.totalorder %s24, 1
      %p114 = por %p112, %p113
      %p116 = scmp.ne.s32.totalorder %s101, %s115
      %p117 = scmp.eq.s32.totalorder %s24, 0
      %p118 = por %p116, %p117
      %s119 = ssub.s32 %s25, %s37
      %s120 = ssub.s32 %s26, %s33
      %s121 = sor.u32 %s119, %s120
      %p122 = scmp.eq.s32.totalorder %s121, 0
      %s124 = sadd.s32 %s123, 1
      %s125 = scalar_select %p122, %s123, %s124
      %p128 = pneg %p122
      %p129 = scmp.eq.s32.totalorder %s18, 1
      %p130 = por %p128, %p129
      %p131 = scmp.ne.s32.totalorder %s123, %s126
      %p132 = scmp.eq.s32.totalorder %s18, 0
      %p133 = por %p131, %p132
      %p134 = scmp.ne.s32.totalorder %s123, %s126
      %p135 = scmp.eq.s32.totalorder %s23, 1
      %p136 = por %p134, %p135
      %p137 = scmp.ne.s32.totalorder %s126, %s127
      %p138 = scmp.eq.s32.totalorder %s23, 0
      %p139 = por %p137, %p138
      %p140 = scmp.ne.s32.totalorder %s126, %s127
      %p141 = scmp.eq.s32.totalorder %s24, 1
      %p142 = por %p140, %p141
      %p144 = scmp.ne.s32.totalorder %s127, %s143
      %p145 = scmp.eq.s32.totalorder %s24, 0
      %p146 = por %p144, %p145
      %s147 = ssub.s32 %s25, %s37
      %s148 = ssub.s32 %s26, %s33
      %s149 = sor.u32 %s147, %s148
      %p150 = scmp.eq.s32.totalorder %s149, 0
      %s152 = sadd.s32 %s151, 1
      %s153 = scalar_select %p150, %s151, %s152
      %p156 = pneg %p150
      %p157 = scmp.eq.s32.totalorder %s18, 1
      %p158 = por %p156, %p157
      %p159 = scmp.ne.s32.totalorder %s151, %s154
      %p160 = scmp.eq.s32.totalorder %s18, 0
      %p161 = por %p159, %p160
      %p162 = scmp.ne.s32.totalorder %s151, %s154
      %p163 = scmp.eq.s32.totalorder %s23, 1
      %p164 = por %p162, %p163
      %p165 = scmp.ne.s32.totalorder %s154, %s155
      %p166 = scmp.eq.s32.totalorder %s23, 0
      %p167 = por %p165, %p166
      %p168 = scmp.ne.s32.totalorder %s154, %s155
      %p169 = scmp.eq.s32.totalorder %s24, 1
      %p170 = por %p168, %p169
      %p172 = scmp.ne.s32.totalorder %s155, %s171
      %p173 = scmp.eq.s32.totalorder %s24, 0
      %p174 = por %p172, %p173
      %s175 = ssub.s32 %s25, %s37
      %s176 = ssub.s32 %s26, %s33
      %s177 = sor.u32 %s175, %s176
      %p178 = scmp.eq.s32.totalorder %s177, 0
      %s180 = sadd.s32 %s179, 1
      %s181 = scalar_select %p178, %s179, %s180
      %p184 = pneg %p178
      %p185 = scmp.eq.s32.totalorder %s18, 1
      %p186 = por %p184, %p185
      %p187 = scmp.ne.s32.totalorder %s179, %s182
      %p188 = scmp.eq.s32.totalorder %s18, 0
      %p189 = por %p187, %p188
      %p190 = scmp.ne.s32.totalorder %s179, %s182
      %p191 = scmp.eq.s32.totalorder %s23, 1
      %p192 = por %p190, %p191
      %p193 = scmp.ne.s32.totalorder %s182, %s183
      %p194 = scmp.eq.s32.totalorder %s23, 0
      %p195 = por %p193, %p194
      %p196 = scmp.ne.s32.totalorder %s182, %s183
      %p197 = scmp.eq.s32.totalorder %s24, 1
      %p198 = por %p196, %p197
      %p200 = scmp.ne.s32.totalorder %s183, %s199
      %p201 = scmp.eq.s32.totalorder %s24, 0
      %p202 = por %p200, %p201
      %p203 = scmp.le.s32.totalorder 1, %s18
      %p204 = scmp.lt.s32.totalorder %s18, 3
      %p205 = pnand %p203, %p204
      %p206 = pneg %p205
      // Predicated region
      $region9: #{tpu_custom_call.1} parent=5 // pred_check
        _
      $region10: #{tpu_custom_call.1} parent=5 // pred_check_branch
        %208 = sbr.rel (%p205) target = $region12
      $region11: #{tpu_custom_call.1} parent=5 // pred_region
        %s209 = ssub.s32 %s18, 1
        // Predicated region
        $region13: #{tpu_custom_call.1} parent=11 // pred_check
          %p210 = pneg %p111
        $region14: #{tpu_custom_call.1} parent=11 // pred_check_branch
          %212 = sbr.rel (%p210) target = $region16
        $region15: #{tpu_custom_call.1} parent=11 // pred_region
          _
        $region16: #{tpu_custom_call.1} parent=11 // pred_fallthru
          _
      $region12: #{tpu_custom_call.1} parent=5 // pred_fallthru
        _
      %p213 = scmp.lt.s32.totalorder %s18, 2
      // Predicated region
      $region17: #{tpu_custom_call.1} parent=5 // pred_check
        %p214 = pneg %p213
      $region18: #{tpu_custom_call.1} parent=5 // pred_check_branch
        %216 = sbr.rel (%p214) target = $region20
      $region19: #{tpu_custom_call.1} parent=5 // pred_region
        // Predicated region
        $region21: #{tpu_custom_call.1} parent=19 // pred_check
          %p217 = pneg %p52
        $region22: #{tpu_custom_call.1} parent=19 // pred_check_branch
          %219 = sbr.rel (%p217) target = $region24
        $region23: #{tpu_custom_call.1} parent=19 // pred_region
          %s220 = smul.u32 16, %s26
          %s221 = ssub.s32 17, %s220
          %p222 = scmp.lt.s32.totalorder %s221, 16
          %s223 = scalar_select %p222, %s221, 16
          %s224 = smul.u32 4, %s223
          %s225 = smul.u32 %s224, 3
          %p226 = scmp.lt.s32.totalorder %s25, 1
          %s227 = scalar_select %p226, %s25, 1
          %p228 = scmp.lt.s32.totalorder %s220, 16
          %s229 = scalar_select %p228, %s220, 16
          %s230 = smul.addr %s229, 3
          %s231 = smul.addr %s227, 51
          %s232 = sadd.s32 %s230, %s231
          %s233 = smul.addr %s232, 4
          %s234 = scalar_lea.vmem %s0, %s233
          %s235 = smul.u32 16, %s26
          %s236 = ssub.s32 17, %s235
          %p237 = scmp.lt.s32.totalorder %s236, 16
          %s238 = scalar_select %p237, %s236, 16
          %s239 = smul.u32 4, %s238
          %s240 = smul.u32 %s239, 3
        $region24: #{tpu_custom_call.1} parent=19 // pred_fallthru
          _
        // Predicated region
        $region25: #{tpu_custom_call.1} parent=19 // pred_check
          %p241 = pneg %p84
        $region26: #{tpu_custom_call.1} parent=19 // pred_check_branch
          %243 = sbr.rel (%p241) target = $region28
        $region27: #{tpu_custom_call.1} parent=19 // pred_region
          %s244 = sadd.s32 %s26, 1
          %s245 = smul.u32 %s244, 16
          %p246 = scmp.lt.s32.totalorder %s25, 1
          %s247 = scalar_select %p246, %s25, 1
          %p248 = scmp.lt.s32.totalorder %s245, 16
          %s249 = scalar_select %p248, %s245, 16
          %s250 = smul.addr %s249, 3
          %s251 = smul.addr %s247, 51
          %s252 = sadd.s32 %s250, %s251
          %s253 = smul.addr %s252, 4
          %s254 = scalar_lea.vmem %s1, %s253
          %s255 = sadd.s32 %s26, 1
          %s256 = smul.u32 %s255, 16
        $region28: #{tpu_custom_call.1} parent=19 // pred_fallthru
          _
      $region20: #{tpu_custom_call.1} parent=5 // pred_fallthru
        _
      %p257 = scmp.le.s32.totalorder 1, %s18
      %p258 = scmp.lt.s32.totalorder %s18, 3
      %p259 = pnand %p257, %p258
      %p260 = pneg %p259
      // Predicated region
      $region29: #{tpu_custom_call.1} parent=5 // pred_check
        _
      $region30: #{tpu_custom_call.1} parent=5 // pred_check_branch
        %262 = sbr.rel (%p259) target = $region32
      $region31: #{tpu_custom_call.1} parent=5 // pred_region
        %s263 = ssub.s32 %s18, 1
        %s264 = smul.u32 16, %s28
        %s265 = ssub.s32 17, %s264
        %p266 = scmp.lt.s32.totalorder %s265, 16
        %s267 = scalar_select %p266, %s265, 16
        %s268 = smul.u32 4, %s267
        %s269 = smul.u32 %s268, 3
        %p270 = scmp.lt.s32.totalorder %s27, 1
        %s271 = scalar_select %p270, %s27, 1
        %p272 = scmp.lt.s32.totalorder %s264, 16
        %s273 = scalar_select %p272, %s264, 16
        %s274 = smul.addr %s273, 3
        %s275 = smul.addr %s271, 51
        %s276 = sadd.s32 %s274, %s275
        %s277 = smul.addr %s276, 4
        %s278 = scalar_lea.vmem %s0, %s277
        %p279 = pneg %p58
        %p280 = pneg %p55
        %s281 = sadd.s32 %s28, 1
        %s282 = smul.u32 %s281, 16
        %p283 = scmp.lt.s32.totalorder %s27, 1
        %s284 = scalar_select %p283, %s27, 1
        %p285 = scmp.lt.s32.totalorder %s282, 16
        %s286 = scalar_select %p285, %s282, 16
        %s287 = smul.addr %s286, 3
        %s288 = smul.addr %s284, 51
        %s289 = sadd.s32 %s287, %s288
        %s290 = smul.addr %s289, 4
        %s291 = scalar_lea.vmem %s1, %s290
        %p292 = pneg %p90
        %p293 = pneg %p87
        %p294 = pneg %p111
        %p295 = pneg %p108
        %p296 = pneg %p139
        %p297 = pneg %p136
        %s298 = sand.u32 %s126, 1
        %s299 = scalar_lea.sflag [#allocation3], %s298
        %s300 = sand.u32 %s126, 1
        %s301 = smul.addr %s300, 512
        %s302 = scalar_lea.vmem [#allocation2], %s301
        %p303 = pneg %p167
        %p304 = pneg %p164
        %s305 = sand.u32 %s23, 1
        %s306 = scalar_lea.sflag [#allocation5], %s305
        %s307 = sand.u32 %s154, 1
        %s308 = scalar_lea.vmem [#allocation4], %s307
        %p309 = pneg %p195
        %p310 = pneg %p192
        %s311 = sand.u32 %s23, 1
        %s312 = scalar_lea.sflag [#allocation5], %s311
        %s313 = sand.u32 %s182, 1
        %s314 = scalar_lea.vmem [#allocation6], %s313
        %s315 = smul.u32 16, %s28
        %s316 = ssub.s32 17, %s315
        %p317 = scmp.lt.s32.totalorder %s316, 16
        %s318 = scalar_select %p317, %s316, 16
        %s319 = smul.u32 4, %s318
        %s320 = smul.u32 %s319, 3
        %p321 = scmp.lt.s32.totalorder %s27, 1
        %s322 = scalar_select %p321, %s27, 1
        %p323 = scmp.lt.s32.totalorder %s315, 16
        %s324 = scalar_select %p323, %s315, 16
        %s325 = smul.addr %s324, 3
        %s326 = smul.addr %s322, 51
        %s327 = sadd.s32 %s325, %s326
        %s328 = smul.addr %s327, 4
        %s329 = scalar_lea.vmem %s0, %s328
        %s330 = smul.u32 16, %s28
        %s331 = ssub.s32 17, %s330
        %p332 = scmp.lt.s32.totalorder %s331, 16
        %s333 = scalar_select %p332, %s331, 16
        %s334 = smul.u32 4, %s333
        %s335 = smul.u32 %s334, 3
        %s336 = sadd.s32 %s28, 1
        %s337 = smul.u32 %s336, 16
        %p338 = scmp.lt.s32.totalorder %s27, 1
        %s339 = scalar_select %p338, %s27, 1
        %p340 = scmp.lt.s32.totalorder %s337, 16
        %s341 = scalar_select %p340, %s337, 16
        %s342 = smul.addr %s341, 3
        %s343 = smul.addr %s339, 51
        %s344 = sadd.s32 %s342, %s343
        %s345 = smul.addr %s344, 4
        %s346 = scalar_lea.vmem %s1, %s345
        %s347 = sadd.s32 %s28, 1
        %s348 = smul.u32 %s347, 16
        %s349 = smul.u32 16, %s28
        %v350 = vld [vmem:[%s329] sm:$0xf]
        %v351 = vld [vmem:[%s329 + $0x4] sm:$0xf]
        %v352 = vld [vmem:[%s329 + $0x8] sm:$0x1]
        %v353 = vld [vmem:[%s329 + $0xc] sm:$0xf]
        %v354 = vld [vmem:[%s329 + $0x10] sm:$0xf]
        %v355 = vld [vmem:[%s329 + $0x14] sm:$0x1]
        %v356 = vld [vmem:[%s329 + $0x18] sm:$0xf]
        %v357 = vld [vmem:[%s329 + $0x1c] sm:$0xf]
        %v358 = vld [vmem:[%s329 + $0x20] sm:$0x1]
        %v359 = vld [vmem:[%s329 + $0x24] sm:$0xf]
        %v360 = vld [vmem:[%s329 + $0x28] sm:$0xf]
        %v361 = vld [vmem:[%s329 + $0x2c] sm:$0x1]
        %v362 = vld [vmem:[%s329 + $0x30] sm:$0xf]
        %v363 = vld [vmem:[%s329 + $0x34] sm:$0xf]
        %v364 = vld [vmem:[%s329 + $0x38] sm:$0x1]
        %v365 = vld [vmem:[%s329 + $0x3c] sm:$0xf]
        %v366 = vld [vmem:[%s329 + $0x40] sm:$0xf]
        %v367 = vld [vmem:[%s329 + $0x44] sm:$0x1]
        %v368 = vld [vmem:[%s329 + $0x48] sm:$0xf]
        %v369 = vld [vmem:[%s329 + $0x4c] sm:$0xf]
        %v370 = vld [vmem:[%s329 + $0x50] sm:$0x1]
        %v371 = vld [vmem:[%s329 + $0x54] sm:$0xf]
        %v372 = vld [vmem:[%s329 + $0x58] sm:$0xf]
        %v373 = vld [vmem:[%s329 + $0x5c] sm:$0x1]
        %v374 = vld [vmem:[%s329 + $0x60] sm:$0xf]
        %v375 = vld [vmem:[%s329 + $0x64] sm:$0xf]
        %v376 = vld [vmem:[%s329 + $0x68] sm:$0x1]
        %v377 = vld [vmem:[%s329 + $0x6c] sm:$0xf]
        %v378 = vld [vmem:[%s329 + $0x70] sm:$0xf]
        %v379 = vld [vmem:[%s329 + $0x74] sm:$0x1]
        %v380 = vld [vmem:[%s329 + $0x78] sm:$0xf]
        %v381 = vld [vmem:[%s329 + $0x7c] sm:$0xf]
        %v382 = vld [vmem:[%s329 + $0x80] sm:$0x1]
        %v383 = vld [vmem:[%s329 + $0x84] sm:$0xf]
        %v384 = vld [vmem:[%s329 + $0x88] sm:$0xf]
        %v385 = vld [vmem:[%s329 + $0x8c] sm:$0x1]
        %v386 = vld [vmem:[%s329 + $0x90] sm:$0xf]
        %v387 = vld [vmem:[%s329 + $0x94] sm:$0xf]
        %v388 = vld [vmem:[%s329 + $0x98] sm:$0x1]
        %v389 = vld [vmem:[%s329 + $0x9c] sm:$0xf]
        %v390 = vld [vmem:[%s329 + $0xa0] sm:$0xf]
        %v391 = vld [vmem:[%s329 + $0xa4] sm:$0x1]
        %v392 = vld [vmem:[%s329 + $0xa8] sm:$0xf]
        %v393 = vld [vmem:[%s329 + $0xac] sm:$0xf]
        %v394 = vld [vmem:[%s329 + $0xb0] sm:$0x1]
        %v395 = vld [vmem:[%s329 + $0xb4] sm:$0xf]
        %v396 = vld [vmem:[%s329 + $0xb8] sm:$0xf]
        %v397 = vld [vmem:[%s329 + $0xbc] sm:$0x1]
        %v398 = vld [vmem:[%s346] sm:$0xf]
        %v399 = vld [vmem:[%s346 + $0x4] sm:$0xf]
        %v400 = vld [vmem:[%s346 + $0x8] sm:$0x1]
        %vm401 = vsmask.f32 3328
        %vm402 = vsmask.f32 7440
        %vm403 = vmor %vm401, %vm402
        %v405 = vshrl.u32 %v350, 16
        %v407 = vrot.slane %v405, 4
        %v408 = vshll.u32 %v350, 16
        %v410 = vrot.slane %v408, 5
        %v411 = vor.u32 %v407, %v410
        %v412 = vrot.slane %v411, 4
        %v414 = vshll.u32 %v351, 16
        %v416 = vrot.slane %v414, 5
        %v417 = vsel %vm403, %v412, %v416
        %v418 = vshrl.u32 %v351, 16
        %v420 = vrot.slane %v418, 4
        %v421 = vor.u32 %v420, %v416
        %v422 = vrot.slane %v421, 4
        %v424 = vshll.u32 %v352, 16
        %v426 = vrot.slane %v424, 5
        %v427 = vsel %vm403, %v422, %v426
        %v429 = vshrl.u32 %v353, 16
        %v431 = vrot.slane %v429, 4
        %v432 = vshll.u32 %v353, 16
        %v434 = vrot.slane %v432, 5
        %v435 = vor.u32 %v431, %v434
        %v436 = vrot.slane %v435, 4
        %v438 = vshll.u32 %v354, 16
        %v440 = vrot.slane %v438, 5
        %v441 = vsel %vm403, %v436, %v440
        %v442 = vshrl.u32 %v354, 16
        %v444 = vrot.slane %v442, 4
        %v445 = vor.u32 %v444, %v440
        %v446 = vrot.slane %v445, 4
        %v448 = vshll.u32 %v355, 16
        %v450 = vrot.slane %v448, 5
        %v451 = vsel %vm403, %v446, %v450
        %v453 = vshrl.u32 %v356, 16
        %v455 = vrot.slane %v453, 4
        %v456 = vshll.u32 %v356, 16
        %v458 = vrot.slane %v456, 5
        %v459 = vor.u32 %v455, %v458
        %v460 = vrot.slane %v459, 4
        %v462 = vshll.u32 %v357, 16
        %v464 = vrot.slane %v462, 5
        %v465 = vsel %vm403, %v460, %v464
        %v466 = vshrl.u32 %v357, 16
        %v468 = vrot.slane %v466, 4
        %v469 = vor.u32 %v468, %v464
        %v470 = vrot.slane %v469, 4
        %v472 = vshll.u32 %v358, 16
        %v474 = vrot.slane %v472, 5
        %v475 = vsel %vm403, %v470, %v474
        %v477 = vshrl.u32 %v359, 16
        %v479 = vrot.slane %v477, 4
        %v480 = vshll.u32 %v359, 16
        %v482 = vrot.slane %v480, 5
        %v483 = vor.u32 %v479, %v482
        %v484 = vrot.slane %v483, 4
        %v486 = vshll.u32 %v360, 16
        %v488 = vrot.slane %v486, 5
        %v489 = vsel %vm403, %v484, %v488
        %v490 = vshrl.u32 %v360, 16
        %v492 = vrot.slane %v490, 4
        %v493 = vor.u32 %v492, %v488
        %v494 = vrot.slane %v493, 4
        %v496 = vshll.u32 %v361, 16
        %v498 = vrot.slane %v496, 5
        %v499 = vsel %vm403, %v494, %v498
        %v501 = vshrl.u32 %v362, 16
        %v503 = vrot.slane %v501, 4
        %v504 = vshll.u32 %v362, 16
        %v506 = vrot.slane %v504, 5
        %v507 = vor.u32 %v503, %v506
        %v508 = vrot.slane %v507, 4
        %v510 = vshll.u32 %v363, 16
        %v512 = vrot.slane %v510, 5
        %v513 = vsel %vm403, %v508, %v512
        %v514 = vshrl.u32 %v363, 16
        %v516 = vrot.slane %v514, 4
        %v517 = vor.u32 %v516, %v512
        %v518 = vrot.slane %v517, 4
        %v520 = vshll.u32 %v364, 16
        %v522 = vrot.slane %v520, 5
        %v523 = vsel %vm403, %v518, %v522
        %v525 = vshrl.u32 %v365, 16
        %v527 = vrot.slane %v525, 4
        %v528 = vshll.u32 %v365, 16
        %v530 = vrot.slane %v528, 5
        %v531 = vor.u32 %v527, %v530
        %v532 = vrot.slane %v531, 4
        %v534 = vshll.u32 %v366, 16
        %v536 = vrot.slane %v534, 5
        %v537 = vsel %vm403, %v532, %v536
        %v538 = vshrl.u32 %v366, 16
        %v540 = vrot.slane %v538, 4
        %v541 = vor.u32 %v540, %v536
        %v542 = vrot.slane %v541, 4
        %v544 = vshll.u32 %v367, 16
        %v546 = vrot.slane %v544, 5
        %v547 = vsel %vm403, %v542, %v546
        %v549 = vshrl.u32 %v368, 16
        %v551 = vrot.slane %v549, 4
        %v552 = vshll.u32 %v368, 16
        %v554 = vrot.slane %v552, 5
        %v555 = vor.u32 %v551, %v554
        %v556 = vrot.slane %v555, 4
        %v558 = vshll.u32 %v369, 16
        %v560 = vrot.slane %v558, 5
        %v561 = vsel %vm403, %v556, %v560
        %v562 = vshrl.u32 %v369, 16
        %v564 = vrot.slane %v562, 4
        %v565 = vor.u32 %v564, %v560
        %v566 = vrot.slane %v565, 4
        %v568 = vshll.u32 %v370, 16
        %v570 = vrot.slane %v568, 5
        %v571 = vsel %vm403, %v566, %v570
        %v573 = vshrl.u32 %v371, 16
        %v575 = vrot.slane %v573, 4
        %v576 = vshll.u32 %v371, 16
        %v578 = vrot.slane %v576, 5
        %v579 = vor.u32 %v575, %v578
        %v580 = vrot.slane %v579, 4
        %v582 = vshll.u32 %v372, 16
        %v584 = vrot.slane %v582, 5
        %v585 = vsel %vm403, %v580, %v584
        %v586 = vshrl.u32 %v372, 16
        %v588 = vrot.slane %v586, 4
        %v589 = vor.u32 %v588, %v584
        %v590 = vrot.slane %v589, 4
        %v592 = vshll.u32 %v373, 16
        %v594 = vrot.slane %v592, 5
        %v595 = vsel %vm403, %v590, %v594
        %v597 = vshrl.u32 %v374, 16
        %v599 = vrot.slane %v597, 4
        %v600 = vshll.u32 %v374, 16
        %v602 = vrot.slane %v600, 5
        %v603 = vor.u32 %v599, %v602
        %v604 = vrot.slane %v603, 4
        %v606 = vshll.u32 %v375, 16
        %v608 = vrot.slane %v606, 5
        %v609 = vsel %vm403, %v604, %v608
        %v610 = vshrl.u32 %v375, 16
        %v612 = vrot.slane %v610, 4
        %v613 = vor.u32 %v612, %v608
        %v614 = vrot.slane %v613, 4
        %v616 = vshll.u32 %v376, 16
        %v618 = vrot.slane %v616, 5
        %v619 = vsel %vm403, %v614, %v618
        %v621 = vshrl.u32 %v377, 16
        %v623 = vrot.slane %v621, 4
        %v624 = vshll.u32 %v377, 16
        %v626 = vrot.slane %v624, 5
        %v627 = vor.u32 %v623, %v626
        %v628 = vrot.slane %v627, 4
        %v630 = vshll.u32 %v378, 16
        %v632 = vrot.slane %v630, 5
        %v633 = vsel %vm403, %v628, %v632
        %v634 = vshrl.u32 %v378, 16
        %v636 = vrot.slane %v634, 4
        %v637 = vor.u32 %v636, %v632
        %v638 = vrot.slane %v637, 4
        %v640 = vshll.u32 %v379, 16
        %v642 = vrot.slane %v640, 5
        %v643 = vsel %vm403, %v638, %v642
        %v645 = vshrl.u32 %v380, 16
        %v647 = vrot.slane %v645, 4
        %v648 = vshll.u32 %v380, 16
        %v650 = vrot.slane %v648, 5
        %v651 = vor.u32 %v647, %v650
        %v652 = vrot.slane %v651, 4
        %v654 = vshll.u32 %v381, 16
        %v656 = vrot.slane %v654, 5
        %v657 = vsel %vm403, %v652, %v656
        %v658 = vshrl.u32 %v381, 16
        %v660 = vrot.slane %v658, 4
        %v661 = vor.u32 %v660, %v656
        %v662 = vrot.slane %v661, 4
        %v664 = vshll.u32 %v382, 16
        %v666 = vrot.slane %v664, 5
        %v667 = vsel %vm403, %v662, %v666
        %v669 = vshrl.u32 %v383, 16
        %v671 = vrot.slane %v669, 4
        %v672 = vshll.u32 %v383, 16
        %v674 = vrot.slane %v672, 5
        %v675 = vor.u32 %v671, %v674
        %v676 = vrot.slane %v675, 4
        %v678 = vshll.u32 %v384, 16
        %v680 = vrot.slane %v678, 5
        %v681 = vsel %vm403, %v676, %v680
        %v682 = vshrl.u32 %v384, 16
        %v684 = vrot.slane %v682, 4
        %v685 = vor.u32 %v684, %v680
        %v686 = vrot.slane %v685, 4
        %v688 = vshll.u32 %v385, 16
        %v690 = vrot.slane %v688, 5
        %v691 = vsel %vm403, %v686, %v690
        %v693 = vshrl.u32 %v386, 16
        %v695 = vrot.slane %v693, 4
        %v696 = vshll.u32 %v386, 16
        %v698 = vrot.slane %v696, 5
        %v699 = vor.u32 %v695, %v698
        %v700 = vrot.slane %v699, 4
        %v702 = vshll.u32 %v387, 16
        %v704 = vrot.slane %v702, 5
        %v705 = vsel %vm403, %v700, %v704
        %v706 = vshrl.u32 %v387, 16
        %v708 = vrot.slane %v706, 4
        %v709 = vor.u32 %v708, %v704
        %v710 = vrot.slane %v709, 4
        %v712 = vshll.u32 %v388, 16
        %v714 = vrot.slane %v712, 5
        %v715 = vsel %vm403, %v710, %v714
        %v717 = vshrl.u32 %v389, 16
        %v719 = vrot.slane %v717, 4
        %v720 = vshll.u32 %v389, 16
        %v722 = vrot.slane %v720, 5
        %v723 = vor.u32 %v719, %v722
        %v724 = vrot.slane %v723, 4
        %v726 = vshll.u32 %v390, 16
        %v728 = vrot.slane %v726, 5
        %v729 = vsel %vm403, %v724, %v728
        %v730 = vshrl.u32 %v390, 16
        %v732 = vrot.slane %v730, 4
        %v733 = vor.u32 %v732, %v728
        %v734 = vrot.slane %v733, 4
        %v736 = vshll.u32 %v391, 16
        %v738 = vrot.slane %v736, 5
        %v739 = vsel %vm403, %v734, %v738
        %v741 = vshrl.u32 %v392, 16
        %v743 = vrot.slane %v741, 4
        %v744 = vshll.u32 %v392, 16
        %v746 = vrot.slane %v744, 5
        %v747 = vor.u32 %v743, %v746
        %v748 = vrot.slane %v747, 4
        %v750 = vshll.u32 %v393, 16
        %v752 = vrot.slane %v750, 5
        %v753 = vsel %vm403, %v748, %v752
        %v754 = vshrl.u32 %v393, 16
        %v756 = vrot.slane %v754, 4
        %v757 = vor.u32 %v756, %v752
        %v758 = vrot.slane %v757, 4
        %v760 = vshll.u32 %v394, 16
        %v762 = vrot.slane %v760, 5
        %v763 = vsel %vm403, %v758, %v762
        %v765 = vshrl.u32 %v395, 16
        %v767 = vrot.slane %v765, 4
        %v768 = vshll.u32 %v395, 16
        %v770 = vrot.slane %v768, 5
        %v771 = vor.u32 %v767, %v770
        %v772 = vrot.slane %v771, 4
        %v774 = vshll.u32 %v396, 16
        %v776 = vrot.slane %v774, 5
        %v777 = vsel %vm403, %v772, %v776
        %v778 = vshrl.u32 %v396, 16
        %v780 = vrot.slane %v778, 4
        %v781 = vor.u32 %v780, %v776
        %v782 = vrot.slane %v781, 4
        %v784 = vshll.u32 %v397, 16
        %v786 = vrot.slane %v784, 5
        %v787 = vsel %vm403, %v782, %v786
        %v789 = vshrl.u32 %v398, 16
        %v791 = vrot.slane %v789, 4
        %v792 = vshll.u32 %v398, 16
        %v794 = vrot.slane %v792, 5
        %v795 = vor.u32 %v791, %v794
        %v796 = vrot.slane %v795, 4
        %v798 = vshll.u32 %v399, 16
        %v800 = vrot.slane %v798, 5
        %v801 = vsel %vm403, %v796, %v800
        %v802 = vshrl.u32 %v399, 16
        %v804 = vrot.slane %v802, 4
        %v805 = vor.u32 %v804, %v800
        %v806 = vrot.slane %v805, 4
        %v808 = vshll.u32 %v400, 16
        %v810 = vrot.slane %v808, 5
        %v811 = vsel %vm403, %v806, %v810
        %v844 = vunpack.c.l.b16 %v350
        %v845 = vunpack.c.l.b16 %v351
        %v846 = vunpack.c.l.b16 %v353
        %v847 = vunpack.c.l.b16 %v354
        %v848 = vunpack.c.l.b16 %v356
        %v849 = vunpack.c.l.b16 %v357
        %v850 = vunpack.c.l.b16 %v359
        %v851 = vunpack.c.l.b16 %v360
        %v852 = vunpack.c.l.b16 %v362
        %v853 = vunpack.c.l.b16 %v363
        %v854 = vunpack.c.l.b16 %v365
        %v855 = vunpack.c.l.b16 %v366
        %v856 = vunpack.c.l.b16 %v368
        %v857 = vunpack.c.l.b16 %v369
        %v858 = vunpack.c.l.b16 %v371
        %v859 = vunpack.c.l.b16 %v372
        %v860 = vunpack.c.l.b16 %v374
        %v861 = vunpack.c.l.b16 %v375
        %v862 = vunpack.c.l.b16 %v377
        %v863 = vunpack.c.l.b16 %v378
        %v864 = vunpack.c.l.b16 %v380
        %v865 = vunpack.c.l.b16 %v381
        %v866 = vunpack.c.l.b16 %v383
        %v867 = vunpack.c.l.b16 %v384
        %v868 = vunpack.c.l.b16 %v386
        %v869 = vunpack.c.l.b16 %v387
        %v870 = vunpack.c.l.b16 %v389
        %v871 = vunpack.c.l.b16 %v390
        %v872 = vunpack.c.l.b16 %v392
        %v873 = vunpack.c.l.b16 %v393
        %v874 = vunpack.c.l.b16 %v395
        %v875 = vunpack.c.l.b16 %v396
        %v876 = vpack.c.b16 %v845, %v844
        %v877 = vpack.c.b16 %v847, %v846
        %v878 = vpack.c.b16 %v849, %v848
        %v879 = vpack.c.b16 %v851, %v850
        %v880 = vpack.c.b16 %v853, %v852
        %v881 = vpack.c.b16 %v855, %v854
        %v882 = vpack.c.b16 %v857, %v856
        %v883 = vpack.c.b16 %v859, %v858
        %v884 = vpack.c.b16 %v861, %v860
        %v885 = vpack.c.b16 %v863, %v862
        %v886 = vpack.c.b16 %v865, %v864
        %v887 = vpack.c.b16 %v867, %v866
        %v888 = vpack.c.b16 %v869, %v868
        %v889 = vpack.c.b16 %v871, %v870
        %v890 = vpack.c.b16 %v873, %v872
        %v891 = vpack.c.b16 %v875, %v874
        %v892 = vunpack.c.l.b16 %v417
        %v893 = vunpack.c.l.b16 %v427
        %v894 = vunpack.c.l.b16 %v441
        %v895 = vunpack.c.l.b16 %v451
        %v896 = vunpack.c.l.b16 %v465
        %v897 = vunpack.c.l.b16 %v475
        %v898 = vunpack.c.l.b16 %v489
        %v899 = vunpack.c.l.b16 %v499
        %v900 = vunpack.c.l.b16 %v513
        %v901 = vunpack.c.l.b16 %v523
        %v902 = vunpack.c.l.b16 %v537
        %v903 = vunpack.c.l.b16 %v547
        %v904 = vunpack.c.l.b16 %v561
        %v905 = vunpack.c.l.b16 %v571
        %v906 = vunpack.c.l.b16 %v585
        %v907 = vunpack.c.l.b16 %v595
        %v908 = vunpack.c.l.b16 %v609
        %v909 = vunpack.c.l.b16 %v619
        %v910 = vunpack.c.l.b16 %v633
        %v911 = vunpack.c.l.b16 %v643
        %v912 = vunpack.c.l.b16 %v657
        %v913 = vunpack.c.l.b16 %v667
        %v914 = vunpack.c.l.b16 %v681
        %v915 = vunpack.c.l.b16 %v691
        %v916 = vunpack.c.l.b16 %v705
        %v917 = vunpack.c.l.b16 %v715
        %v918 = vunpack.c.l.b16 %v729
        %v919 = vunpack.c.l.b16 %v739
        %v920 = vunpack.c.l.b16 %v753
        %v921 = vunpack.c.l.b16 %v763
        %v922 = vunpack.c.l.b16 %v777
        %v923 = vunpack.c.l.b16 %v787
        %v924 = vpack.c.b16 %v893, %v892
        %v925 = vpack.c.b16 %v895, %v894
        %v926 = vpack.c.b16 %v897, %v896
        %v927 = vpack.c.b16 %v899, %v898
        %v928 = vpack.c.b16 %v901, %v900
        %v929 = vpack.c.b16 %v903, %v902
        %v930 = vpack.c.b16 %v905, %v904
        %v931 = vpack.c.b16 %v907, %v906
        %v932 = vpack.c.b16 %v909, %v908
        %v933 = vpack.c.b16 %v911, %v910
        %v934 = vpack.c.b16 %v913, %v912
        %v935 = vpack.c.b16 %v915, %v914
        %v936 = vpack.c.b16 %v917, %v916
        %v937 = vpack.c.b16 %v919, %v918
        %v938 = vpack.c.b16 %v921, %v920
        %v939 = vpack.c.b16 %v923, %v922
        %940 = vrot.lane.b32.xlu0 %v924, 32
        %v941 = vpop.permute.xlu0 %940
        %942 = vrot.lane.b32.xlu0 %v925, 32
        %v943 = vpop.permute.xlu0 %942
        %944 = vrot.lane.b32.xlu0 %v926, 32
        %v945 = vpop.permute.xlu0 %944
        %946 = vrot.lane.b32.xlu0 %v927, 32
        %v947 = vpop.permute.xlu0 %946
        %948 = vrot.lane.b32.xlu0 %v928, 32
        %v949 = vpop.permute.xlu0 %948
        %950 = vrot.lane.b32.xlu0 %v929, 32
        %v951 = vpop.permute.xlu0 %950
        %952 = vrot.lane.b32.xlu0 %v930, 32
        %v953 = vpop.permute.xlu0 %952
        %954 = vrot.lane.b32.xlu0 %v931, 32
        %v955 = vpop.permute.xlu0 %954
        %956 = vrot.lane.b32.xlu0 %v932, 32
        %v957 = vpop.permute.xlu0 %956
        %958 = vrot.lane.b32.xlu0 %v933, 32
        %v959 = vpop.permute.xlu0 %958
        %960 = vrot.lane.b32.xlu0 %v934, 32
        %v961 = vpop.permute.xlu0 %960
        %962 = vrot.lane.b32.xlu0 %v935, 32
        %v963 = vpop.permute.xlu0 %962
        %964 = vrot.lane.b32.xlu0 %v936, 32
        %v965 = vpop.permute.xlu0 %964
        %966 = vrot.lane.b32.xlu0 %v937, 32
        %v967 = vpop.permute.xlu0 %966
        %968 = vrot.lane.b32.xlu0 %v938, 32
        %v969 = vpop.permute.xlu0 %968
        %970 = vrot.lane.b32.xlu0 %v939, 32
        %v971 = vpop.permute.xlu0 %970
        %v974 = vunpack.c.l.b16 %v398
        %v975 = vunpack.c.l.b16 %v399
        %v976 = vpack.c.b16 %v975, %v974
        %977 = vrot.lane.b32.xlu0 %v877, 64
        %v978 = vpop.permute.xlu0 %977
        %979 = vrot.lane.b32.xlu0 %v878, 64
        %v980 = vpop.permute.xlu0 %979
        %981 = vrot.lane.b32.xlu0 %v879, 64
        %v982 = vpop.permute.xlu0 %981
        %983 = vrot.lane.b32.xlu0 %v880, 64
        %v984 = vpop.permute.xlu0 %983
        %985 = vrot.lane.b32.xlu0 %v881, 64
        %v986 = vpop.permute.xlu0 %985
        %987 = vrot.lane.b32.xlu0 %v882, 64
        %v988 = vpop.permute.xlu0 %987
        %989 = vrot.lane.b32.xlu0 %v883, 64
        %v990 = vpop.permute.xlu0 %989
        %991 = vrot.lane.b32.xlu0 %v884, 64
        %v992 = vpop.permute.xlu0 %991
        %993 = vrot.lane.b32.xlu0 %v885, 64
        %v994 = vpop.permute.xlu0 %993
        %995 = vrot.lane.b32.xlu0 %v886, 64
        %v996 = vpop.permute.xlu0 %995
        %997 = vrot.lane.b32.xlu0 %v887, 64
        %v998 = vpop.permute.xlu0 %997
        %999 = vrot.lane.b32.xlu0 %v888, 64
        %v1000 = vpop.permute.xlu0 %999
        %1001 = vrot.lane.b32.xlu0 %v889, 64
        %v1002 = vpop.permute.xlu0 %1001
        %1003 = vrot.lane.b32.xlu0 %v890, 64
        %v1004 = vpop.permute.xlu0 %1003
        %1005 = vrot.lane.b32.xlu0 %v891, 64
        %v1006 = vpop.permute.xlu0 %1005
        %1007 = vrot.lane.b32.xlu0 %v976, 64
        %v1008 = vpop.permute.xlu0 %1007
        %v1009 = vunpack.c.l.b16 %v801
        %v1010 = vunpack.c.l.b16 %v811
        %v1011 = vpack.c.b16 %v1010, %v1009
        %1012 = vrot.lane.b32.xlu0 %v925, 96
        %v1013 = vpop.permute.xlu0 %1012
        %1014 = vrot.lane.b32.xlu0 %v926, 96
        %v1015 = vpop.permute.xlu0 %1014
        %1016 = vrot.lane.b32.xlu0 %v927, 96
        %v1017 = vpop.permute.xlu0 %1016
        %1018 = vrot.lane.b32.xlu0 %v928, 96
        %v1019 = vpop.permute.xlu0 %1018
        %1020 = vrot.lane.b32.xlu0 %v929, 96
        %v1021 = vpop.permute.xlu0 %1020
        %1022 = vrot.lane.b32.xlu0 %v930, 96
        %v1023 = vpop.permute.xlu0 %1022
        %1024 = vrot.lane.b32.xlu0 %v931, 96
        %v1025 = vpop.permute.xlu0 %1024
        %1026 = vrot.lane.b32.xlu0 %v932, 96
        %v1027 = vpop.permute.xlu0 %1026
        %1028 = vrot.lane.b32.xlu0 %v933, 96
        %v1029 = vpop.permute.xlu0 %1028
        %1030 = vrot.lane.b32.xlu0 %v934, 96
        %v1031 = vpop.permute.xlu0 %1030
        %1032 = vrot.lane.b32.xlu0 %v935, 96
        %v1033 = vpop.permute.xlu0 %1032
        %1034 = vrot.lane.b32.xlu0 %v936, 96
        %v1035 = vpop.permute.xlu0 %1034
        %1036 = vrot.lane.b32.xlu0 %v937, 96
        %v1037 = vpop.permute.xlu0 %1036
        %1038 = vrot.lane.b32.xlu0 %v938, 96
        %v1039 = vpop.permute.xlu0 %1038
        %1040 = vrot.lane.b32.xlu0 %v939, 96
        %v1041 = vpop.permute.xlu0 %1040
        %1042 = vrot.lane.b32.xlu0 %v1011, 96
        %v1043 = vpop.permute.xlu0 %1042
        %vm1044 = vcmask 261120
        %v1047 = vsel %vm1044, %v876, %v941
        %v1050 = vsel %vm1044, %v877, %v943
        %v1053 = vsel %vm1044, %v878, %v945
        %v1056 = vsel %vm1044, %v879, %v947
        %v1059 = vsel %vm1044, %v880, %v949
        %v1062 = vsel %vm1044, %v881, %v951
        %v1065 = vsel %vm1044, %v882, %v953
        %v1068 = vsel %vm1044, %v883, %v955
        %v1071 = vsel %vm1044, %v884, %v957
        %v1074 = vsel %vm1044, %v885, %v959
        %v1077 = vsel %vm1044, %v886, %v961
        %v1080 = vsel %vm1044, %v887, %v963
        %v1083 = vsel %vm1044, %v888, %v965
        %v1086 = vsel %vm1044, %v889, %v967
        %v1089 = vsel %vm1044, %v890, %v969
        %v1092 = vsel %vm1044, %v891, %v971
        %vm1093 = vcmask 523264
        %v1095 = vsel %vm1093, %v1047, %v978
        %v1097 = vsel %vm1093, %v1050, %v980
        %v1099 = vsel %vm1093, %v1053, %v982
        %v1101 = vsel %vm1093, %v1056, %v984
        %v1103 = vsel %vm1093, %v1059, %v986
        %v1105 = vsel %vm1093, %v1062, %v988
        %v1107 = vsel %vm1093, %v1065, %v990
        %v1109 = vsel %vm1093, %v1068, %v992
        %v1111 = vsel %vm1093, %v1071, %v994
        %v1113 = vsel %vm1093, %v1074, %v996
        %v1115 = vsel %vm1093, %v1077, %v998
        %v1117 = vsel %vm1093, %v1080, %v1000
        %v1119 = vsel %vm1093, %v1083, %v1002
        %v1121 = vsel %vm1093, %v1086, %v1004
        %v1123 = vsel %vm1093, %v1089, %v1006
        %v1125 = vsel %vm1093, %v1092, %v1008
        %vm1126 = vcmask 785408
        %v1128 = vsel %vm1126, %v1095, %v1013
        %v1131 = vsel %vm1126, %v1097, %v1015
        %v1134 = vsel %vm1126, %v1099, %v1017
        %v1137 = vsel %vm1126, %v1101, %v1019
        %v1140 = vsel %vm1126, %v1103, %v1021
        %v1143 = vsel %vm1126, %v1105, %v1023
        %v1146 = vsel %vm1126, %v1107, %v1025
        %v1149 = vsel %vm1126, %v1109, %v1027
        %v1152 = vsel %vm1126, %v1111, %v1029
        %v1155 = vsel %vm1126, %v1113, %v1031
        %v1158 = vsel %vm1126, %v1115, %v1033
        %v1161 = vsel %vm1126, %v1117, %v1035
        %v1164 = vsel %vm1126, %v1119, %v1037
        %v1167 = vsel %vm1126, %v1121, %v1039
        %v1170 = vsel %vm1126, %v1123, %v1041
        %v1173 = vsel %vm1126, %v1125, %v1043
        %v1175 = vld [vmem:[%s2] sm:$0xff]
        %v1176 = vld [vmem:[%s2 + $0x8] sm:$0xff]
        %v1177 = vld [vmem:[%s2 + $0x10] sm:$0xff]
        %v1178 = vld [vmem:[%s2 + $0x18] sm:$0xff]
        %v1179 = vld [vmem:[%s2 + $0x20] sm:$0xff]
        %v1180 = vld [vmem:[%s2 + $0x28] sm:$0xff]
        %v1181 = vld [vmem:[%s2 + $0x30] sm:$0xff]
        %v1182 = vld [vmem:[%s2 + $0x38] sm:$0xff]
        %v1183 = vld [vmem:[%s2 + $0x40] sm:$0xff]
        %v1184 = vld [vmem:[%s2 + $0x48] sm:$0xff]
        %v1185 = vld [vmem:[%s2 + $0x50] sm:$0xff]
        %v1186 = vld [vmem:[%s2 + $0x58] sm:$0xff]
        %v1187 = vld [vmem:[%s2 + $0x60] sm:$0xff]
        %v1188 = vld [vmem:[%s2 + $0x68] sm:$0xff]
        %v1189 = vld [vmem:[%s2 + $0x70] sm:$0xff]
        %v1190 = vld [vmem:[%s2 + $0x78] sm:$0xff]
        %v1191 = vld [vmem:[%s2 + $0x80] sm:$0xff]
        %v1192 = vld [vmem:[%s2 + $0x88] sm:$0xff]
        %v1193 = vld [vmem:[%s2 + $0x90] sm:$0xff]
        %v1194 = vld [vmem:[%s2 + $0x98] sm:$0xff]
        %v1195 = vld [vmem:[%s2 + $0xa0] sm:$0xff]
        %v1196 = vld [vmem:[%s2 + $0xa8] sm:$0xff]
        %v1197 = vld [vmem:[%s2 + $0xb0] sm:$0xff]
        %v1198 = vld [vmem:[%s2 + $0xb8] sm:$0xff]
        %v1199 = vld [vmem:[%s2 + $0xc0] sm:$0xff]
        %v1200 = vld [vmem:[%s2 + $0xc8] sm:$0xff]
        %v1201 = vld [vmem:[%s2 + $0xd0] sm:$0xff]
        %v1202 = vld [vmem:[%s2 + $0xd8] sm:$0xff]
        %v1203 = vld [vmem:[%s2 + $0xe0] sm:$0xff]
        %v1204 = vld [vmem:[%s2 + $0xe8] sm:$0xff]
        %v1205 = vld [vmem:[%s2 + $0xf0] sm:$0xff]
        %v1206 = vld [vmem:[%s2 + $0xf8] sm:$0xff]
        %v1239 = vunpack.c.l.b16 %v1175
        %v1240 = vunpack.c.h.b16 %v1175
        %v1241 = vunpack.c.l.b16 %v1176
        %v1242 = vunpack.c.h.b16 %v1176
        %v1243 = vunpack.c.l.b16 %v1177
        %v1244 = vunpack.c.h.b16 %v1177
        %v1245 = vunpack.c.l.b16 %v1178
        %v1246 = vunpack.c.h.b16 %v1178
        %v1247 = vunpack.c.l.b16 %v1179
        %v1248 = vunpack.c.h.b16 %v1179
        %v1249 = vunpack.c.l.b16 %v1180
        %v1250 = vunpack.c.h.b16 %v1180
        %v1251 = vunpack.c.l.b16 %v1181
        %v1252 = vunpack.c.h.b16 %v1181
        %v1253 = vunpack.c.l.b16 %v1182
        %v1254 = vunpack.c.h.b16 %v1182
        %v1255 = vunpack.c.l.b16 %v1183
        %v1256 = vunpack.c.h.b16 %v1183
        %v1257 = vunpack.c.l.b16 %v1184
        %v1258 = vunpack.c.h.b16 %v1184
        %v1259 = vunpack.c.l.b16 %v1185
        %v1260 = vunpack.c.h.b16 %v1185
        %v1261 = vunpack.c.l.b16 %v1186
        %v1262 = vunpack.c.h.b16 %v1186
        %v1263 = vunpack.c.l.b16 %v1187
        %v1264 = vunpack.c.h.b16 %v1187
        %v1265 = vunpack.c.l.b16 %v1188
        %v1266 = vunpack.c.h.b16 %v1188
        %v1267 = vunpack.c.l.b16 %v1189
        %v1268 = vunpack.c.h.b16 %v1189
        %v1269 = vunpack.c.l.b16 %v1190
        %v1270 = vunpack.c.h.b16 %v1190
        %v1271 = vunpack.c.l.b16 %v1191
        %v1272 = vunpack.c.h.b16 %v1191
        %v1273 = vunpack.c.l.b16 %v1192
        %v1274 = vunpack.c.h.b16 %v1192
        %v1275 = vunpack.c.l.b16 %v1193
        %v1276 = vunpack.c.h.b16 %v1193
        %v1277 = vunpack.c.l.b16 %v1194
        %v1278 = vunpack.c.h.b16 %v1194
        %v1279 = vunpack.c.l.b16 %v1195
        %v1280 = vunpack.c.h.b16 %v1195
        %v1281 = vunpack.c.l.b16 %v1196
        %v1282 = vunpack.c.h.b16 %v1196
        %v1283 = vunpack.c.l.b16 %v1197
        %v1284 = vunpack.c.h.b16 %v1197
        %v1285 = vunpack.c.l.b16 %v1198
        %v1286 = vunpack.c.h.b16 %v1198
        %v1287 = vunpack.c.l.b16 %v1199
        %v1288 = vunpack.c.h.b16 %v1199
        %v1289 = vunpack.c.l.b16 %v1200
        %v1290 = vunpack.c.h.b16 %v1200
        %v1291 = vunpack.c.l.b16 %v1201
        %v1292 = vunpack.c.h.b16 %v1201
        %v1293 = vunpack.c.l.b16 %v1202
        %v1294 = vunpack.c.h.b16 %v1202
        %v1295 = vunpack.c.l.b16 %v1203
        %v1296 = vunpack.c.h.b16 %v1203
        %v1297 = vunpack.c.l.b16 %v1204
        %v1298 = vunpack.c.h.b16 %v1204
        %v1299 = vunpack.c.l.b16 %v1205
        %v1300 = vunpack.c.h.b16 %v1205
        %v1301 = vunpack.c.l.b16 %v1206
        %v1302 = vunpack.c.h.b16 %v1206
        %v1303 = vpack.c.b16 %v1243, %v1239
        %v1304 = vpack.c.b16 %v1244, %v1240
        %v1305 = vpack.c.b16 %v1245, %v1241
        %v1306 = vpack.c.b16 %v1246, %v1242
        %v1307 = vpack.c.b16 %v1251, %v1247
        %v1308 = vpack.c.b16 %v1252, %v1248
        %v1309 = vpack.c.b16 %v1253, %v1249
        %v1310 = vpack.c.b16 %v1254, %v1250
        %v1311 = vpack.c.b16 %v1259, %v1255
        %v1312 = vpack.c.b16 %v1260, %v1256
        %v1313 = vpack.c.b16 %v1261, %v1257
        %v1314 = vpack.c.b16 %v1262, %v1258
        %v1315 = vpack.c.b16 %v1267, %v1263
        %v1316 = vpack.c.b16 %v1268, %v1264
        %v1317 = vpack.c.b16 %v1269, %v1265
        %v1318 = vpack.c.b16 %v1270, %v1266
        %v1319 = vpack.c.b16 %v1275, %v1271
        %v1320 = vpack.c.b16 %v1276, %v1272
        %v1321 = vpack.c.b16 %v1277, %v1273
        %v1322 = vpack.c.b16 %v1278, %v1274
        %v1323 = vpack.c.b16 %v1283, %v1279
        %v1324 = vpack.c.b16 %v1284, %v1280
        %v1325 = vpack.c.b16 %v1285, %v1281
        %v1326 = vpack.c.b16 %v1286, %v1282
        %v1327 = vpack.c.b16 %v1291, %v1287
        %v1328 = vpack.c.b16 %v1292, %v1288
        %v1329 = vpack.c.b16 %v1293, %v1289
        %v1330 = vpack.c.b16 %v1294, %v1290
        %v1331 = vpack.c.b16 %v1299, %v1295
        %v1332 = vpack.c.b16 %v1300, %v1296
        %v1333 = vpack.c.b16 %v1301, %v1297
        %v1334 = vpack.c.b16 %v1302, %v1298
        %1367 = vmatpush.bf16.msra.mxu0 %v1331
        %1368 = vmatpush.bf16.msra.mxu0 %v1327
        %1369 = vmatpush.bf16.msra.mxu0 %v1323
        %1370 = vmatpush.bf16.msra.mxu0 %v1319
        %1371 = vmatpush.bf16.msra.mxu0 %v1315
        %1372 = vmatpush.bf16.msra.mxu0 %v1311
        %1373 = vmatpush.bf16.msra.mxu0 %v1307
        %1374 = vmatpush.bf16.msra.mxu0 %v1303
        %1375 = vmatmul.bf16.gmra.mxu0 %v1128
        %v1376 = vpop.f32.mrf.mxu0
        %v1377 = vadd.f32 0.0, %v1376
        %v1378 = vpop.f32.mrf.mxu0
        %v1379 = vadd.f32 0.0, %v1378
        %1380 = vmatmul.bf16.gmra.mxu0 %v1131
        %v1381 = vpop.f32.mrf.mxu0
        %v1382 = vadd.f32 0.0, %v1381
        %v1383 = vpop.f32.mrf.mxu0
        %v1384 = vadd.f32 0.0, %v1383
        %1385 = vmatmul.bf16.gmra.mxu0 %v1134
        %v1386 = vpop.f32.mrf.mxu0
        %v1387 = vadd.f32 0.0, %v1386
        %v1388 = vpop.f32.mrf.mxu0
        %v1389 = vadd.f32 0.0, %v1388
        %1390 = vmatmul.bf16.gmra.mxu0 %v1137
        %v1391 = vpop.f32.mrf.mxu0
        %v1392 = vadd.f32 0.0, %v1391
        %v1393 = vpop.f32.mrf.mxu0
        %v1394 = vadd.f32 0.0, %v1393
        %1395 = vmatmul.bf16.gmra.mxu0 %v1140
        %v1396 = vpop.f32.mrf.mxu0
        %v1397 = vadd.f32 0.0, %v1396
        %v1398 = vpop.f32.mrf.mxu0
        %v1399 = vadd.f32 0.0, %v1398
        %1400 = vmatmul.bf16.gmra.mxu0 %v1143
        %v1401 = vpop.f32.mrf.mxu0
        %v1402 = vadd.f32 0.0, %v1401
        %v1403 = vpop.f32.mrf.mxu0
        %v1404 = vadd.f32 0.0, %v1403
        %1405 = vmatmul.bf16.gmra.mxu0 %v1146
        %v1406 = vpop.f32.mrf.mxu0
        %v1407 = vadd.f32 0.0, %v1406
        %v1408 = vpop.f32.mrf.mxu0
        %v1409 = vadd.f32 0.0, %v1408
        %1410 = vmatmul.bf16.gmra.mxu0 %v1149
        %v1411 = vpop.f32.mrf.mxu0
        %v1412 = vadd.f32 0.0, %v1411
        %v1413 = vpop.f32.mrf.mxu0
        %v1414 = vadd.f32 0.0, %v1413
        %1415 = vmatmul.bf16.gmra.mxu0 %v1152
        %v1416 = vpop.f32.mrf.mxu0
        %v1417 = vadd.f32 0.0, %v1416
        %v1418 = vpop.f32.mrf.mxu0
        %v1419 = vadd.f32 0.0, %v1418
        %1420 = vmatmul.bf16.gmra.mxu0 %v1155
        %v1421 = vpop.f32.mrf.mxu0
        %v1422 = vadd.f32 0.0, %v1421
        %v1423 = vpop.f32.mrf.mxu0
        %v1424 = vadd.f32 0.0, %v1423
        %1425 = vmatmul.bf16.gmra.mxu0 %v1158
        %v1426 = vpop.f32.mrf.mxu0
        %v1427 = vadd.f32 0.0, %v1426
        %v1428 = vpop.f32.mrf.mxu0
        %v1429 = vadd.f32 0.0, %v1428
        %1430 = vmatmul.bf16.gmra.mxu0 %v1161
        %v1431 = vpop.f32.mrf.mxu0
        %v1432 = vadd.f32 0.0, %v1431
        %v1433 = vpop.f32.mrf.mxu0
        %v1434 = vadd.f32 0.0, %v1433
        %1435 = vmatmul.bf16.gmra.mxu0 %v1164
        %v1436 = vpop.f32.mrf.mxu0
        %v1437 = vadd.f32 0.0, %v1436
        %v1438 = vpop.f32.mrf.mxu0
        %v1439 = vadd.f32 0.0, %v1438
        %1440 = vmatmul.bf16.gmra.mxu0 %v1167
        %v1441 = vpop.f32.mrf.mxu0
        %v1442 = vadd.f32 0.0, %v1441
        %v1443 = vpop.f32.mrf.mxu0
        %v1444 = vadd.f32 0.0, %v1443
        %1445 = vmatmul.bf16.gmra.mxu0 %v1170
        %v1446 = vpop.f32.mrf.mxu0
        %v1447 = vadd.f32 0.0, %v1446
        %v1448 = vpop.f32.mrf.mxu0
        %v1449 = vadd.f32 0.0, %v1448
        %1450 = vmatmul.bf16.gmra.mxu0 %v1173
        %v1451 = vpop.f32.mrf.mxu0
        %v1452 = vadd.f32 0.0, %v1451
        %v1453 = vpop.f32.mrf.mxu0
        %v1454 = vadd.f32 0.0, %v1453
        %1455 = vdwg.mxu0
        %1456 = vmatpush.bf16.msra.mxu0 %v1332
        %1457 = vmatpush.bf16.msra.mxu0 %v1328
        %1458 = vmatpush.bf16.msra.mxu0 %v1324
        %1459 = vmatpush.bf16.msra.mxu0 %v1320
        %1460 = vmatpush.bf16.msra.mxu0 %v1316
        %1461 = vmatpush.bf16.msra.mxu0 %v1312
        %1462 = vmatpush.bf16.msra.mxu0 %v1308
        %1463 = vmatpush.bf16.msra.mxu0 %v1304
        %1464 = vmatmul.bf16.gmra.mxu0 %v1128
        %v1465 = vpop.f32.mrf.mxu0
        %v1466 = vadd.f32 0.0, %v1465
        %v1467 = vpop.f32.mrf.mxu0
        %v1468 = vadd.f32 0.0, %v1467
        %1469 = vmatmul.bf16.gmra.mxu0 %v1131
        %v1470 = vpop.f32.mrf.mxu0
        %v1471 = vadd.f32 0.0, %v1470
        %v1472 = vpop.f32.mrf.mxu0
        %v1473 = vadd.f32 0.0, %v1472
        %1474 = vmatmul.bf16.gmra.mxu0 %v1134
        %v1475 = vpop.f32.mrf.mxu0
        %v1476 = vadd.f32 0.0, %v1475
        %v1477 = vpop.f32.mrf.mxu0
        %v1478 = vadd.f32 0.0, %v1477
        %1479 = vmatmul.bf16.gmra.mxu0 %v1137
        %v1480 = vpop.f32.mrf.mxu0
        %v1481 = vadd.f32 0.0, %v1480
        %v1482 = vpop.f32.mrf.mxu0
        %v1483 = vadd.f32 0.0, %v1482
        %1484 = vmatmul.bf16.gmra.mxu0 %v1140
        %v1485 = vpop.f32.mrf.mxu0
        %v1486 = vadd.f32 0.0, %v1485
        %v1487 = vpop.f32.mrf.mxu0
        %v1488 = vadd.f32 0.0, %v1487
        %1489 = vmatmul.bf16.gmra.mxu0 %v1143
        %v1490 = vpop.f32.mrf.mxu0
        %v1491 = vadd.f32 0.0, %v1490
        %v1492 = vpop.f32.mrf.mxu0
        %v1493 = vadd.f32 0.0, %v1492
        %1494 = vmatmul.bf16.gmra.mxu0 %v1146
        %v1495 = vpop.f32.mrf.mxu0
        %v1496 = vadd.f32 0.0, %v1495
        %v1497 = vpop.f32.mrf.mxu0
        %v1498 = vadd.f32 0.0, %v1497
        %1499 = vmatmul.bf16.gmra.mxu0 %v1149
        %v1500 = vpop.f32.mrf.mxu0
        %v1501 = vadd.f32 0.0, %v1500
        %v1502 = vpop.f32.mrf.mxu0
        %v1503 = vadd.f32 0.0, %v1502
        %1504 = vmatmul.bf16.gmra.mxu0 %v1152
        %v1505 = vpop.f32.mrf.mxu0
        %v1506 = vadd.f32 0.0, %v1505
        %v1507 = vpop.f32.mrf.mxu0
        %v1508 = vadd.f32 0.0, %v1507
        %1509 = vmatmul.bf16.gmra.mxu0 %v1155
        %v1510 = vpop.f32.mrf.mxu0
        %v1511 = vadd.f32 0.0, %v1510
        %v1512 = vpop.f32.mrf.mxu0
        %v1513 = vadd.f32 0.0, %v1512
        %1514 = vmatmul.bf16.gmra.mxu0 %v1158
        %v1515 = vpop.f32.mrf.mxu0
        %v1516 = vadd.f32 0.0, %v1515
        %v1517 = vpop.f32.mrf.mxu0
        %v1518 = vadd.f32 0.0, %v1517
        %1519 = vmatmul.bf16.gmra.mxu0 %v1161
        %v1520 = vpop.f32.mrf.mxu0
        %v1521 = vadd.f32 0.0, %v1520
        %v1522 = vpop.f32.mrf.mxu0
        %v1523 = vadd.f32 0.0, %v1522
        %1524 = vmatmul.bf16.gmra.mxu0 %v1164
        %v1525 = vpop.f32.mrf.mxu0
        %v1526 = vadd.f32 0.0, %v1525
        %v1527 = vpop.f32.mrf.mxu0
        %v1528 = vadd.f32 0.0, %v1527
        %1529 = vmatmul.bf16.gmra.mxu0 %v1167
        %v1530 = vpop.f32.mrf.mxu0
        %v1531 = vadd.f32 0.0, %v1530
        %v1532 = vpop.f32.mrf.mxu0
        %v1533 = vadd.f32 0.0, %v1532
        %1534 = vmatmul.bf16.gmra.mxu0 %v1170
        %v1535 = vpop.f32.mrf.mxu0
        %v1536 = vadd.f32 0.0, %v1535
        %v1537 = vpop.f32.mrf.mxu0
        %v1538 = vadd.f32 0.0, %v1537
        %1539 = vmatmul.bf16.gmra.mxu0 %v1173
        %v1540 = vpop.f32.mrf.mxu0
        %v1541 = vadd.f32 0.0, %v1540
        %v1542 = vpop.f32.mrf.mxu0
        %v1543 = vadd.f32 0.0, %v1542
        %1544 = vdwg.mxu0
        %1545 = vmatpush.bf16.msra.mxu0 %v1333
        %1546 = vmatpush.bf16.msra.mxu0 %v1329
        %1547 = vmatpush.bf16.msra.mxu0 %v1325
        %1548 = vmatpush.bf16.msra.mxu0 %v1321
        %1549 = vmatpush.bf16.msra.mxu0 %v1317
        %1550 = vmatpush.bf16.msra.mxu0 %v1313
        %1551 = vmatpush.bf16.msra.mxu0 %v1309
        %1552 = vmatpush.bf16.msra.mxu0 %v1305
        %1553 = vmatmul.bf16.gmra.mxu0 %v1128
        %v1554 = vpop.f32.mrf.mxu0
        %v1555 = vadd.f32 0.0, %v1554
        %v1556 = vpop.f32.mrf.mxu0
        %v1557 = vadd.f32 0.0, %v1556
        %1558 = vmatmul.bf16.gmra.mxu0 %v1131
        %v1559 = vpop.f32.mrf.mxu0
        %v1560 = vadd.f32 0.0, %v1559
        %v1561 = vpop.f32.mrf.mxu0
        %v1562 = vadd.f32 0.0, %v1561
        %1563 = vmatmul.bf16.gmra.mxu0 %v1134
        %v1564 = vpop.f32.mrf.mxu0
        %v1565 = vadd.f32 0.0, %v1564
        %v1566 = vpop.f32.mrf.mxu0
        %v1567 = vadd.f32 0.0, %v1566
        %1568 = vmatmul.bf16.gmra.mxu0 %v1137
        %v1569 = vpop.f32.mrf.mxu0
        %v1570 = vadd.f32 0.0, %v1569
        %v1571 = vpop.f32.mrf.mxu0
        %v1572 = vadd.f32 0.0, %v1571
        %1573 = vmatmul.bf16.gmra.mxu0 %v1140
        %v1574 = vpop.f32.mrf.mxu0
        %v1575 = vadd.f32 0.0, %v1574
        %v1576 = vpop.f32.mrf.mxu0
        %v1577 = vadd.f32 0.0, %v1576
        %1578 = vmatmul.bf16.gmra.mxu0 %v1143
        %v1579 = vpop.f32.mrf.mxu0
        %v1580 = vadd.f32 0.0, %v1579
        %v1581 = vpop.f32.mrf.mxu0
        %v1582 = vadd.f32 0.0, %v1581
        %1583 = vmatmul.bf16.gmra.mxu0 %v1146
        %v1584 = vpop.f32.mrf.mxu0
        %v1585 = vadd.f32 0.0, %v1584
        %v1586 = vpop.f32.mrf.mxu0
        %v1587 = vadd.f32 0.0, %v1586
        %1588 = vmatmul.bf16.gmra.mxu0 %v1149
        %v1589 = vpop.f32.mrf.mxu0
        %v1590 = vadd.f32 0.0, %v1589
        %v1591 = vpop.f32.mrf.mxu0
        %v1592 = vadd.f32 0.0, %v1591
        %1593 = vmatmul.bf16.gmra.mxu0 %v1152
        %v1594 = vpop.f32.mrf.mxu0
        %v1595 = vadd.f32 0.0, %v1594
        %v1596 = vpop.f32.mrf.mxu0
        %v1597 = vadd.f32 0.0, %v1596
        %1598 = vmatmul.bf16.gmra.mxu0 %v1155
        %v1599 = vpop.f32.mrf.mxu0
        %v1600 = vadd.f32 0.0, %v1599
        %v1601 = vpop.f32.mrf.mxu0
        %v1602 = vadd.f32 0.0, %v1601
        %1603 = vmatmul.bf16.gmra.mxu0 %v1158
        %v1604 = vpop.f32.mrf.mxu0
        %v1605 = vadd.f32 0.0, %v1604
        %v1606 = vpop.f32.mrf.mxu0
        %v1607 = vadd.f32 0.0, %v1606
        %1608 = vmatmul.bf16.gmra.mxu0 %v1161
        %v1609 = vpop.f32.mrf.mxu0
        %v1610 = vadd.f32 0.0, %v1609
        %v1611 = vpop.f32.mrf.mxu0
        %v1612 = vadd.f32 0.0, %v1611
        %1613 = vmatmul.bf16.gmra.mxu0 %v1164
        %v1614 = vpop.f32.mrf.mxu0
        %v1615 = vadd.f32 0.0, %v1614
        %v1616 = vpop.f32.mrf.mxu0
        %v1617 = vadd.f32 0.0, %v1616
        %1618 = vmatmul.bf16.gmra.mxu0 %v1167
        %v1619 = vpop.f32.mrf.mxu0
        %v1620 = vadd.f32 0.0, %v1619
        %v1621 = vpop.f32.mrf.mxu0
        %v1622 = vadd.f32 0.0, %v1621
        %1623 = vmatmul.bf16.gmra.mxu0 %v1170
        %v1624 = vpop.f32.mrf.mxu0
        %v1625 = vadd.f32 0.0, %v1624
        %v1626 = vpop.f32.mrf.mxu0
        %v1627 = vadd.f32 0.0, %v1626
        %1628 = vmatmul.bf16.gmra.mxu0 %v1173
        %v1629 = vpop.f32.mrf.mxu0
        %v1630 = vadd.f32 0.0, %v1629
        %v1631 = vpop.f32.mrf.mxu0
        %v1632 = vadd.f32 0.0, %v1631
        %1633 = vdwg.mxu0
        %1634 = vmatpush.bf16.msra.mxu0 %v1334
        %1635 = vmatpush.bf16.msra.mxu0 %v1330
        %1636 = vmatpush.bf16.msra.mxu0 %v1326
        %1637 = vmatpush.bf16.msra.mxu0 %v1322
        %1638 = vmatpush.bf16.msra.mxu0 %v1318
        %1639 = vmatpush.bf16.msra.mxu0 %v1314
        %1640 = vmatpush.bf16.msra.mxu0 %v1310
        %1641 = vmatpush.bf16.msra.mxu0 %v1306
        %1642 = vmatmul.bf16.gmra.mxu0 %v1128
        %v1643 = vpop.f32.mrf.mxu0
        %v1644 = vadd.f32 0.0, %v1643
        %v1645 = vpop.f32.mrf.mxu0
        %v1646 = vadd.f32 0.0, %v1645
        %1647 = vmatmul.bf16.gmra.mxu0 %v1131
        %v1648 = vpop.f32.mrf.mxu0
        %v1649 = vadd.f32 0.0, %v1648
        %v1650 = vpop.f32.mrf.mxu0
        %v1651 = vadd.f32 0.0, %v1650
        %1652 = vmatmul.bf16.gmra.mxu0 %v1134
        %v1653 = vpop.f32.mrf.mxu0
        %v1654 = vadd.f32 0.0, %v1653
        %v1655 = vpop.f32.mrf.mxu0
        %v1656 = vadd.f32 0.0, %v1655
        %1657 = vmatmul.bf16.gmra.mxu0 %v1137
        %v1658 = vpop.f32.mrf.mxu0
        %v1659 = vadd.f32 0.0, %v1658
        %v1660 = vpop.f32.mrf.mxu0
        %v1661 = vadd.f32 0.0, %v1660
        %1662 = vmatmul.bf16.gmra.mxu0 %v1140
        %v1663 = vpop.f32.mrf.mxu0
        %v1664 = vadd.f32 0.0, %v1663
        %v1665 = vpop.f32.mrf.mxu0
        %v1666 = vadd.f32 0.0, %v1665
        %1667 = vmatmul.bf16.gmra.mxu0 %v1143
        %v1668 = vpop.f32.mrf.mxu0
        %v1669 = vadd.f32 0.0, %v1668
        %v1670 = vpop.f32.mrf.mxu0
        %v1671 = vadd.f32 0.0, %v1670
        %1672 = vmatmul.bf16.gmra.mxu0 %v1146
        %v1673 = vpop.f32.mrf.mxu0
        %v1674 = vadd.f32 0.0, %v1673
        %v1675 = vpop.f32.mrf.mxu0
        %v1676 = vadd.f32 0.0, %v1675
        %1677 = vmatmul.bf16.gmra.mxu0 %v1149
        %v1678 = vpop.f32.mrf.mxu0
        %v1679 = vadd.f32 0.0, %v1678
        %v1680 = vpop.f32.mrf.mxu0
        %v1681 = vadd.f32 0.0, %v1680
        %1682 = vmatmul.bf16.gmra.mxu0 %v1152
        %v1683 = vpop.f32.mrf.mxu0
        %v1684 = vadd.f32 0.0, %v1683
        %v1685 = vpop.f32.mrf.mxu0
        %v1686 = vadd.f32 0.0, %v1685
        %1687 = vmatmul.bf16.gmra.mxu0 %v1155
        %v1688 = vpop.f32.mrf.mxu0
        %v1689 = vadd.f32 0.0, %v1688
        %v1690 = vpop.f32.mrf.mxu0
        %v1691 = vadd.f32 0.0, %v1690
        %1692 = vmatmul.bf16.gmra.mxu0 %v1158
        %v1693 = vpop.f32.mrf.mxu0
        %v1694 = vadd.f32 0.0, %v1693
        %v1695 = vpop.f32.mrf.mxu0
        %v1696 = vadd.f32 0.0, %v1695
        %1697 = vmatmul.bf16.gmra.mxu0 %v1161
        %v1698 = vpop.f32.mrf.mxu0
        %v1699 = vadd.f32 0.0, %v1698
        %v1700 = vpop.f32.mrf.mxu0
        %v1701 = vadd.f32 0.0, %v1700
        %1702 = vmatmul.bf16.gmra.mxu0 %v1164
        %v1703 = vpop.f32.mrf.mxu0
        %v1704 = vadd.f32 0.0, %v1703
        %v1705 = vpop.f32.mrf.mxu0
        %v1706 = vadd.f32 0.0, %v1705
        %1707 = vmatmul.bf16.gmra.mxu0 %v1167
        %v1708 = vpop.f32.mrf.mxu0
        %v1709 = vadd.f32 0.0, %v1708
        %v1710 = vpop.f32.mrf.mxu0
        %v1711 = vadd.f32 0.0, %v1710
        %1712 = vmatmul.bf16.gmra.mxu0 %v1170
        %v1713 = vpop.f32.mrf.mxu0
        %v1714 = vadd.f32 0.0, %v1713
        %v1715 = vpop.f32.mrf.mxu0
        %v1716 = vadd.f32 0.0, %v1715
        %1717 = vmatmul.bf16.gmra.mxu0 %v1173
        %v1718 = vpop.f32.mrf.mxu0
        %v1719 = vadd.f32 0.0, %v1718
        %v1720 = vpop.f32.mrf.mxu0
        %v1721 = vadd.f32 0.0, %v1720
        %1722 = vdwg.mxu0
        %v1723 = vadd.f32 %v1377, %v1379
        %v1724 = vadd.f32 %v1723, %v1382
        %v1725 = vadd.f32 %v1724, %v1384
        %v1726 = vadd.f32 %v1725, %v1387
        %v1727 = vadd.f32 %v1726, %v1389
        %v1728 = vadd.f32 %v1727, %v1392
        %v1729 = vadd.f32 %v1728, %v1394
        %v1730 = vadd.f32 %v1729, %v1397
        %v1731 = vadd.f32 %v1730, %v1399
        %v1732 = vadd.f32 %v1731, %v1402
        %v1733 = vadd.f32 %v1732, %v1404
        %v1734 = vadd.f32 %v1733, %v1407
        %v1735 = vadd.f32 %v1734, %v1409
        %v1736 = vadd.f32 %v1735, %v1412
        %v1737 = vadd.f32 %v1736, %v1414
        %v1738 = vadd.f32 %v1737, %v1417
        %v1739 = vadd.f32 %v1738, %v1419
        %v1740 = vadd.f32 %v1739, %v1422
        %v1741 = vadd.f32 %v1740, %v1424
        %v1742 = vadd.f32 %v1741, %v1427
        %v1743 = vadd.f32 %v1742, %v1429
        %v1744 = vadd.f32 %v1743, %v1432
        %v1745 = vadd.f32 %v1744, %v1434
        %v1746 = vadd.f32 %v1745, %v1437
        %v1747 = vadd.f32 %v1746, %v1439
        %v1748 = vadd.f32 %v1747, %v1442
        %v1749 = vadd.f32 %v1748, %v1444
        %v1750 = vadd.f32 %v1749, %v1447
        %v1751 = vadd.f32 %v1750, %v1449
        %v1752 = vadd.f32 %v1751, %v1452
        %v1753 = vadd.f32 %v1752, %v1454
        %v1754 = vrot.slane %v1753, 4
        %v1755 = vadd.f32 %v1753, %v1754
        %v1756 = vrot.slane %v1755, 2
        %v1757 = vadd.f32 %v1755, %v1756
        %v1758 = vrot.slane %v1757, 1
        %v1759 = vadd.f32 %v1757, %v1758
        %v1760 = vadd.f32 %v1759, 0.0
        %v1761 = vmul.f32 %v1377, %v1377
        %v1762 = vmul.f32 %v1379, %v1379
        %v1763 = vmul.f32 %v1382, %v1382
        %v1764 = vmul.f32 %v1384, %v1384
        %v1765 = vmul.f32 %v1387, %v1387
        %v1766 = vmul.f32 %v1389, %v1389
        %v1767 = vmul.f32 %v1392, %v1392
        %v1768 = vmul.f32 %v1394, %v1394
        %v1769 = vmul.f32 %v1397, %v1397
        %v1770 = vmul.f32 %v1399, %v1399
        %v1771 = vmul.f32 %v1402, %v1402
        %v1772 = vmul.f32 %v1404, %v1404
        %v1773 = vmul.f32 %v1407, %v1407
        %v1774 = vmul.f32 %v1409, %v1409
        %v1775 = vmul.f32 %v1412, %v1412
        %v1776 = vmul.f32 %v1414, %v1414
        %v1777 = vmul.f32 %v1417, %v1417
        %v1778 = vmul.f32 %v1419, %v1419
        %v1779 = vmul.f32 %v1422, %v1422
        %v1780 = vmul.f32 %v1424, %v1424
        %v1781 = vmul.f32 %v1427, %v1427
        %v1782 = vmul.f32 %v1429, %v1429
        %v1783 = vmul.f32 %v1432, %v1432
        %v1784 = vmul.f32 %v1434, %v1434
        %v1785 = vmul.f32 %v1437, %v1437
        %v1786 = vmul.f32 %v1439, %v1439
        %v1787 = vmul.f32 %v1442, %v1442
        %v1788 = vmul.f32 %v1444, %v1444
        %v1789 = vmul.f32 %v1447, %v1447
        %v1790 = vmul.f32 %v1449, %v1449
        %v1791 = vmul.f32 %v1452, %v1452
        %v1792 = vmul.f32 %v1454, %v1454
        %v1793 = vadd.f32 %v1761, %v1762
        %v1794 = vadd.f32 %v1793, %v1763
        %v1795 = vadd.f32 %v1794, %v1764
        %v1796 = vadd.f32 %v1795, %v1765
        %v1797 = vadd.f32 %v1796, %v1766
        %v1798 = vadd.f32 %v1797, %v1767
        %v1799 = vadd.f32 %v1798, %v1768
        %v1800 = vadd.f32 %v1799, %v1769
        %v1801 = vadd.f32 %v1800, %v1770
        %v1802 = vadd.f32 %v1801, %v1771
        %v1803 = vadd.f32 %v1802, %v1772
        %v1804 = vadd.f32 %v1803, %v1773
        %v1805 = vadd.f32 %v1804, %v1774
        %v1806 = vadd.f32 %v1805, %v1775
        %v1807 = vadd.f32 %v1806, %v1776
        %v1808 = vadd.f32 %v1807, %v1777
        %v1809 = vadd.f32 %v1808, %v1778
        %v1810 = vadd.f32 %v1809, %v1779
        %v1811 = vadd.f32 %v1810, %v1780
        %v1812 = vadd.f32 %v1811, %v1781
        %v1813 = vadd.f32 %v1812, %v1782
        %v1814 = vadd.f32 %v1813, %v1783
        %v1815 = vadd.f32 %v1814, %v1784
        %v1816 = vadd.f32 %v1815, %v1785
        %v1817 = vadd.f32 %v1816, %v1786
        %v1818 = vadd.f32 %v1817, %v1787
        %v1819 = vadd.f32 %v1818, %v1788
        %v1820 = vadd.f32 %v1819, %v1789
        %v1821 = vadd.f32 %v1820, %v1790
        %v1822 = vadd.f32 %v1821, %v1791
        %v1823 = vadd.f32 %v1822, %v1792
        %v1824 = vrot.slane %v1823, 4
        %v1825 = vadd.f32 %v1823, %v1824
        %v1826 = vrot.slane %v1825, 2
        %v1827 = vadd.f32 %v1825, %v1826
        %v1828 = vrot.slane %v1827, 1
        %v1829 = vadd.f32 %v1827, %v1828
        %v1830 = vadd.f32 %v1829, 0.0
        %v1831 = vpack.c.bf16 %v1377, %v1377
        %v1832 = vpack.c.bf16 %v1379, %v1379
        %v1833 = vpack.c.bf16 %v1382, %v1382
        %v1834 = vpack.c.bf16 %v1384, %v1384
        %v1835 = vpack.c.bf16 %v1387, %v1387
        %v1836 = vpack.c.bf16 %v1389, %v1389
        %v1837 = vpack.c.bf16 %v1392, %v1392
        %v1838 = vpack.c.bf16 %v1394, %v1394
        %v1839 = vpack.c.bf16 %v1397, %v1397
        %v1840 = vpack.c.bf16 %v1399, %v1399
        %v1841 = vpack.c.bf16 %v1402, %v1402
        %v1842 = vpack.c.bf16 %v1404, %v1404
        %v1843 = vpack.c.bf16 %v1407, %v1407
        %v1844 = vpack.c.bf16 %v1409, %v1409
        %v1845 = vpack.c.bf16 %v1412, %v1412
        %v1846 = vpack.c.bf16 %v1414, %v1414
        %v1847 = vpack.c.bf16 %v1417, %v1417
        %v1848 = vpack.c.bf16 %v1419, %v1419
        %v1849 = vpack.c.bf16 %v1422, %v1422
        %v1850 = vpack.c.bf16 %v1424, %v1424
        %v1851 = vpack.c.bf16 %v1427, %v1427
        %v1852 = vpack.c.bf16 %v1429, %v1429
        %v1853 = vpack.c.bf16 %v1432, %v1432
        %v1854 = vpack.c.bf16 %v1434, %v1434
        %v1855 = vpack.c.bf16 %v1437, %v1437
        %v1856 = vpack.c.bf16 %v1439, %v1439
        %v1857 = vpack.c.bf16 %v1442, %v1442
        %v1858 = vpack.c.bf16 %v1444, %v1444
        %v1859 = vpack.c.bf16 %v1447, %v1447
        %v1860 = vpack.c.bf16 %v1449, %v1449
        %v1861 = vpack.c.bf16 %v1452, %v1452
        %v1862 = vpack.c.bf16 %v1454, %v1454
        %1863 = vst [vmem:[%s302] sm:$0xf] %v1831
        %1864 = vst [vmem:[%s302 + $0x4] sm:$0xf] %v1832
        %1865 = vst [vmem:[%s302 + $0x8] sm:$0xf] %v1833
        %1866 = vst [vmem:[%s302 + $0xc] sm:$0xf] %v1834
        %1867 = vst [vmem:[%s302 + $0x10] sm:$0xf] %v1835
        %1868 = vst [vmem:[%s302 + $0x14] sm:$0xf] %v1836
        %1869 = vst [vmem:[%s302 + $0x18] sm:$0xf] %v1837
        %1870 = vst [vmem:[%s302 + $0x1c] sm:$0xf] %v1838
        %1871 = vst [vmem:[%s302 + $0x20] sm:$0xf] %v1839
        %1872 = vst [vmem:[%s302 + $0x24] sm:$0xf] %v1840
        %1873 = vst [vmem:[%s302 + $0x28] sm:$0xf] %v1841
        %1874 = vst [vmem:[%s302 + $0x2c] sm:$0xf] %v1842
        %1875 = vst [vmem:[%s302 + $0x30] sm:$0xf] %v1843
        %1876 = vst [vmem:[%s302 + $0x34] sm:$0xf] %v1844
        %1877 = vst [vmem:[%s302 + $0x38] sm:$0xf] %v1845
        %1878 = vst [vmem:[%s302 + $0x3c] sm:$0xf] %v1846
        %1879 = vst [vmem:[%s302 + $0x40] sm:$0xf] %v1847
        %1880 = vst [vmem:[%s302 + $0x44] sm:$0xf] %v1848
        %1881 = vst [vmem:[%s302 + $0x48] sm:$0xf] %v1849
        %1882 = vst [vmem:[%s302 + $0x4c] sm:$0xf] %v1850
        %1883 = vst [vmem:[%s302 + $0x50] sm:$0xf] %v1851
        %1884 = vst [vmem:[%s302 + $0x54] sm:$0xf] %v1852
        %1885 = vst [vmem:[%s302 + $0x58] sm:$0xf] %v1853
        %1886 = vst [vmem:[%s302 + $0x5c] sm:$0xf] %v1854
        %1887 = vst [vmem:[%s302 + $0x60] sm:$0xf] %v1855
        %1888 = vst [vmem:[%s302 + $0x64] sm:$0xf] %v1856
        %1889 = vst [vmem:[%s302 + $0x68] sm:$0xf] %v1857
        %1890 = vst [vmem:[%s302 + $0x6c] sm:$0xf] %v1858
        %1891 = vst [vmem:[%s302 + $0x70] sm:$0xf] %v1859
        %1892 = vst [vmem:[%s302 + $0x74] sm:$0xf] %v1860
        %1893 = vst [vmem:[%s302 + $0x78] sm:$0xf] %v1861
        %1894 = vst [vmem:[%s302 + $0x7c] sm:$0xf] %v1862
        %v1895 = vadd.f32 %v1466, %v1468
        %v1896 = vadd.f32 %v1895, %v1471
        %v1897 = vadd.f32 %v1896, %v1473
        %v1898 = vadd.f32 %v1897, %v1476
        %v1899 = vadd.f32 %v1898, %v1478
        %v1900 = vadd.f32 %v1899, %v1481
        %v1901 = vadd.f32 %v1900, %v1483
        %v1902 = vadd.f32 %v1901, %v1486
        %v1903 = vadd.f32 %v1902, %v1488
        %v1904 = vadd.f32 %v1903, %v1491
        %v1905 = vadd.f32 %v1904, %v1493
        %v1906 = vadd.f32 %v1905, %v1496
        %v1907 = vadd.f32 %v1906, %v1498
        %v1908 = vadd.f32 %v1907, %v1501
        %v1909 = vadd.f32 %v1908, %v1503
        %v1910 = vadd.f32 %v1909, %v1506
        %v1911 = vadd.f32 %v1910, %v1508
        %v1912 = vadd.f32 %v1911, %v1511
        %v1913 = vadd.f32 %v1912, %v1513
        %v1914 = vadd.f32 %v1913, %v1516
        %v1915 = vadd.f32 %v1914, %v1518
        %v1916 = vadd.f32 %v1915, %v1521
        %v1917 = vadd.f32 %v1916, %v1523
        %v1918 = vadd.f32 %v1917, %v1526
        %v1919 = vadd.f32 %v1918, %v1528
        %v1920 = vadd.f32 %v1919, %v1531
        %v1921 = vadd.f32 %v1920, %v1533
        %v1922 = vadd.f32 %v1921, %v1536
        %v1923 = vadd.f32 %v1922, %v1538
        %v1924 = vadd.f32 %v1923, %v1541
        %v1925 = vadd.f32 %v1924, %v1543
        %v1926 = vrot.slane %v1925, 4
        %v1927 = vadd.f32 %v1925, %v1926
        %v1928 = vrot.slane %v1927, 2
        %v1929 = vadd.f32 %v1927, %v1928
        %v1930 = vrot.slane %v1929, 1
        %v1931 = vadd.f32 %v1929, %v1930
        %v1932 = vadd.f32 %v1760, %v1931
        %v1933 = vmul.f32 %v1466, %v1466
        %v1934 = vmul.f32 %v1468, %v1468
        %v1935 = vmul.f32 %v1471, %v1471
        %v1936 = vmul.f32 %v1473, %v1473
        %v1937 = vmul.f32 %v1476, %v1476
        %v1938 = vmul.f32 %v1478, %v1478
        %v1939 = vmul.f32 %v1481, %v1481
        %v1940 = vmul.f32 %v1483, %v1483
        %v1941 = vmul.f32 %v1486, %v1486
        %v1942 = vmul.f32 %v1488, %v1488
        %v1943 = vmul.f32 %v1491, %v1491
        %v1944 = vmul.f32 %v1493, %v1493
        %v1945 = vmul.f32 %v1496, %v1496
        %v1946 = vmul.f32 %v1498, %v1498
        %v1947 = vmul.f32 %v1501, %v1501
        %v1948 = vmul.f32 %v1503, %v1503
        %v1949 = vmul.f32 %v1506, %v1506
        %v1950 = vmul.f32 %v1508, %v1508
        %v1951 = vmul.f32 %v1511, %v1511
        %v1952 = vmul.f32 %v1513, %v1513
        %v1953 = vmul.f32 %v1516, %v1516
        %v1954 = vmul.f32 %v1518, %v1518
        %v1955 = vmul.f32 %v1521, %v1521
        %v1956 = vmul.f32 %v1523, %v1523
        %v1957 = vmul.f32 %v1526, %v1526
        %v1958 = vmul.f32 %v1528, %v1528
        %v1959 = vmul.f32 %v1531, %v1531
        %v1960 = vmul.f32 %v1533, %v1533
        %v1961 = vmul.f32 %v1536, %v1536
        %v1962 = vmul.f32 %v1538, %v1538
        %v1963 = vmul.f32 %v1541, %v1541
        %v1964 = vmul.f32 %v1543, %v1543
        %v1965 = vadd.f32 %v1933, %v1934
        %v1966 = vadd.f32 %v1965, %v1935
        %v1967 = vadd.f32 %v1966, %v1936
        %v1968 = vadd.f32 %v1967, %v1937
        %v1969 = vadd.f32 %v1968, %v1938
        %v1970 = vadd.f32 %v1969, %v1939
        %v1971 = vadd.f32 %v1970, %v1940
        %v1972 = vadd.f32 %v1971, %v1941
        %v1973 = vadd.f32 %v1972, %v1942
        %v1974 = vadd.f32 %v1973, %v1943
        %v1975 = vadd.f32 %v1974, %v1944
        %v1976 = vadd.f32 %v1975, %v1945
        %v1977 = vadd.f32 %v1976, %v1946
        %v1978 = vadd.f32 %v1977, %v1947
        %v1979 = vadd.f32 %v1978, %v1948
        %v1980 = vadd.f32 %v1979, %v1949
        %v1981 = vadd.f32 %v1980, %v1950
        %v1982 = vadd.f32 %v1981, %v1951
        %v1983 = vadd.f32 %v1982, %v1952
        %v1984 = vadd.f32 %v1983, %v1953
        %v1985 = vadd.f32 %v1984, %v1954
        %v1986 = vadd.f32 %v1985, %v1955
        %v1987 = vadd.f32 %v1986, %v1956
        %v1988 = vadd.f32 %v1987, %v1957
        %v1989 = vadd.f32 %v1988, %v1958
        %v1990 = vadd.f32 %v1989, %v1959
        %v1991 = vadd.f32 %v1990, %v1960
        %v1992 = vadd.f32 %v1991, %v1961
        %v1993 = vadd.f32 %v1992, %v1962
        %v1994 = vadd.f32 %v1993, %v1963
        %v1995 = vadd.f32 %v1994, %v1964
        %v1996 = vrot.slane %v1995, 4
        %v1997 = vadd.f32 %v1995, %v1996
        %v1998 = vrot.slane %v1997, 2
        %v1999 = vadd.f32 %v1997, %v1998
        %v2000 = vrot.slane %v1999, 1
        %v2001 = vadd.f32 %v1999, %v2000
        %v2002 = vadd.f32 %v1830, %v2001
        %v2003 = vpack.c.bf16 %v1466, %v1466
        %v2004 = vpack.c.bf16 %v1468, %v1468
        %v2005 = vpack.c.bf16 %v1471, %v1471
        %v2006 = vpack.c.bf16 %v1473, %v1473
        %v2007 = vpack.c.bf16 %v1476, %v1476
        %v2008 = vpack.c.bf16 %v1478, %v1478
        %v2009 = vpack.c.bf16 %v1481, %v1481
        %v2010 = vpack.c.bf16 %v1483, %v1483
        %v2011 = vpack.c.bf16 %v1486, %v1486
        %v2012 = vpack.c.bf16 %v1488, %v1488
        %v2013 = vpack.c.bf16 %v1491, %v1491
        %v2014 = vpack.c.bf16 %v1493, %v1493
        %v2015 = vpack.c.bf16 %v1496, %v1496
        %v2016 = vpack.c.bf16 %v1498, %v1498
        %v2017 = vpack.c.bf16 %v1501, %v1501
        %v2018 = vpack.c.bf16 %v1503, %v1503
        %v2019 = vpack.c.bf16 %v1506, %v1506
        %v2020 = vpack.c.bf16 %v1508, %v1508
        %v2021 = vpack.c.bf16 %v1511, %v1511
        %v2022 = vpack.c.bf16 %v1513, %v1513
        %v2023 = vpack.c.bf16 %v1516, %v1516
        %v2024 = vpack.c.bf16 %v1518, %v1518
        %v2025 = vpack.c.bf16 %v1521, %v1521
        %v2026 = vpack.c.bf16 %v1523, %v1523
        %v2027 = vpack.c.bf16 %v1526, %v1526
        %v2028 = vpack.c.bf16 %v1528, %v1528
        %v2029 = vpack.c.bf16 %v1531, %v1531
        %v2030 = vpack.c.bf16 %v1533, %v1533
        %v2031 = vpack.c.bf16 %v1536, %v1536
        %v2032 = vpack.c.bf16 %v1538, %v1538
        %v2033 = vpack.c.bf16 %v1541, %v1541
        %v2034 = vpack.c.bf16 %v1543, %v1543
        %s2035 = scalar_lea.vmem %s302, 128 [#allocation2]
        %2036 = vst [vmem:[%s2035] sm:$0xf] %v2003
        %2037 = vst [vmem:[%s2035 + $0x4] sm:$0xf] %v2004
        %2038 = vst [vmem:[%s2035 + $0x8] sm:$0xf] %v2005
        %2039 = vst [vmem:[%s2035 + $0xc] sm:$0xf] %v2006
        %2040 = vst [vmem:[%s2035 + $0x10] sm:$0xf] %v2007
        %2041 = vst [vmem:[%s2035 + $0x14] sm:$0xf] %v2008
        %2042 = vst [vmem:[%s2035 + $0x18] sm:$0xf] %v2009
        %2043 = vst [vmem:[%s2035 + $0x1c] sm:$0xf] %v2010
        %2044 = vst [vmem:[%s2035 + $0x20] sm:$0xf] %v2011
        %2045 = vst [vmem:[%s2035 + $0x24] sm:$0xf] %v2012
        %2046 = vst [vmem:[%s2035 + $0x28] sm:$0xf] %v2013
        %2047 = vst [vmem:[%s2035 + $0x2c] sm:$0xf] %v2014
        %2048 = vst [vmem:[%s2035 + $0x30] sm:$0xf] %v2015
        %2049 = vst [vmem:[%s2035 + $0x34] sm:$0xf] %v2016
        %2050 = vst [vmem:[%s2035 + $0x38] sm:$0xf] %v2017
        %2051 = vst [vmem:[%s2035 + $0x3c] sm:$0xf] %v2018
        %2052 = vst [vmem:[%s2035 + $0x40] sm:$0xf] %v2019
        %2053 = vst [vmem:[%s2035 + $0x44] sm:$0xf] %v2020
        %2054 = vst [vmem:[%s2035 + $0x48] sm:$0xf] %v2021
        %2055 = vst [vmem:[%s2035 + $0x4c] sm:$0xf] %v2022
        %2056 = vst [vmem:[%s2035 + $0x50] sm:$0xf] %v2023
        %2057 = vst [vmem:[%s2035 + $0x54] sm:$0xf] %v2024
        %2058 = vst [vmem:[%s2035 + $0x58] sm:$0xf] %v2025
        %2059 = vst [vmem:[%s2035 + $0x5c] sm:$0xf] %v2026
        %2060 = vst [vmem:[%s2035 + $0x60] sm:$0xf] %v2027
        %2061 = vst [vmem:[%s2035 + $0x64] sm:$0xf] %v2028
        %2062 = vst [vmem:[%s2035 + $0x68] sm:$0xf] %v2029
        %2063 = vst [vmem:[%s2035 + $0x6c] sm:$0xf] %v2030
        %2064 = vst [vmem:[%s2035 + $0x70] sm:$0xf] %v2031
        %2065 = vst [vmem:[%s2035 + $0x74] sm:$0xf] %v2032
        %2066 = vst [vmem:[%s2035 + $0x78] sm:$0xf] %v2033
        %2067 = vst [vmem:[%s2035 + $0x7c] sm:$0xf] %v2034
        %v2068 = vadd.f32 %v1555, %v1557
        %v2069 = vadd.f32 %v2068, %v1560
        %v2070 = vadd.f32 %v2069, %v1562
        %v2071 = vadd.f32 %v2070, %v1565
        %v2072 = vadd.f32 %v2071, %v1567
        %v2073 = vadd.f32 %v2072, %v1570
        %v2074 = vadd.f32 %v2073, %v1572
        %v2075 = vadd.f32 %v2074, %v1575
        %v2076 = vadd.f32 %v2075, %v1577
        %v2077 = vadd.f32 %v2076, %v1580
        %v2078 = vadd.f32 %v2077, %v1582
        %v2079 = vadd.f32 %v2078, %v1585
        %v2080 = vadd.f32 %v2079, %v1587
        %v2081 = vadd.f32 %v2080, %v1590
        %v2082 = vadd.f32 %v2081, %v1592
        %v2083 = vadd.f32 %v2082, %v1595
        %v2084 = vadd.f32 %v2083, %v1597
        %v2085 = vadd.f32 %v2084, %v1600
        %v2086 = vadd.f32 %v2085, %v1602
        %v2087 = vadd.f32 %v2086, %v1605
        %v2088 = vadd.f32 %v2087, %v1607
        %v2089 = vadd.f32 %v2088, %v1610
        %v2090 = vadd.f32 %v2089, %v1612
        %v2091 = vadd.f32 %v2090, %v1615
        %v2092 = vadd.f32 %v2091, %v1617
        %v2093 = vadd.f32 %v2092, %v1620
        %v2094 = vadd.f32 %v2093, %v1622
        %v2095 = vadd.f32 %v2094, %v1625
        %v2096 = vadd.f32 %v2095, %v1627
        %v2097 = vadd.f32 %v2096, %v1630
        %v2098 = vadd.f32 %v2097, %v1632
        %v2099 = vrot.slane %v2098, 4
        %v2100 = vadd.f32 %v2098, %v2099
        %v2101 = vrot.slane %v2100, 2
        %v2102 = vadd.f32 %v2100, %v2101
        %v2103 = vrot.slane %v2102, 1
        %v2104 = vadd.f32 %v2102, %v2103
        %v2105 = vadd.f32 %v1932, %v2104
        %v2106 = vmul.f32 %v1555, %v1555
        %v2107 = vmul.f32 %v1557, %v1557
        %v2108 = vmul.f32 %v1560, %v1560
        %v2109 = vmul.f32 %v1562, %v1562
        %v2110 = vmul.f32 %v1565, %v1565
        %v2111 = vmul.f32 %v1567, %v1567
        %v2112 = vmul.f32 %v1570, %v1570
        %v2113 = vmul.f32 %v1572, %v1572
        %v2114 = vmul.f32 %v1575, %v1575
        %v2115 = vmul.f32 %v1577, %v1577
        %v2116 = vmul.f32 %v1580, %v1580
        %v2117 = vmul.f32 %v1582, %v1582
        %v2118 = vmul.f32 %v1585, %v1585
        %v2119 = vmul.f32 %v1587, %v1587
        %v2120 = vmul.f32 %v1590, %v1590
        %v2121 = vmul.f32 %v1592, %v1592
        %v2122 = vmul.f32 %v1595, %v1595
        %v2123 = vmul.f32 %v1597, %v1597
        %v2124 = vmul.f32 %v1600, %v1600
        %v2125 = vmul.f32 %v1602, %v1602
        %v2126 = vmul.f32 %v1605, %v1605
        %v2127 = vmul.f32 %v1607, %v1607
        %v2128 = vmul.f32 %v1610, %v1610
        %v2129 = vmul.f32 %v1612, %v1612
        %v2130 = vmul.f32 %v1615, %v1615
        %v2131 = vmul.f32 %v1617, %v1617
        %v2132 = vmul.f32 %v1620, %v1620
        %v2133 = vmul.f32 %v1622, %v1622
        %v2134 = vmul.f32 %v1625, %v1625
        %v2135 = vmul.f32 %v1627, %v1627
        %v2136 = vmul.f32 %v1630, %v1630
        %v2137 = vmul.f32 %v1632, %v1632
        %v2138 = vadd.f32 %v2106, %v2107
        %v2139 = vadd.f32 %v2138, %v2108
        %v2140 = vadd.f32 %v2139, %v2109
        %v2141 = vadd.f32 %v2140, %v2110
        %v2142 = vadd.f32 %v2141, %v2111
        %v2143 = vadd.f32 %v2142, %v2112
        %v2144 = vadd.f32 %v2143, %v2113
        %v2145 = vadd.f32 %v2144, %v2114
        %v2146 = vadd.f32 %v2145, %v2115
        %v2147 = vadd.f32 %v2146, %v2116
        %v2148 = vadd.f32 %v2147, %v2117
        %v2149 = vadd.f32 %v2148, %v2118
        %v2150 = vadd.f32 %v2149, %v2119
        %v2151 = vadd.f32 %v2150, %v2120
        %v2152 = vadd.f32 %v2151, %v2121
        %v2153 = vadd.f32 %v2152, %v2122
        %v2154 = vadd.f32 %v2153, %v2123
        %v2155 = vadd.f32 %v2154, %v2124
        %v2156 = vadd.f32 %v2155, %v2125
        %v2157 = vadd.f32 %v2156, %v2126
        %v2158 = vadd.f32 %v2157, %v2127
        %v2159 = vadd.f32 %v2158, %v2128
        %v2160 = vadd.f32 %v2159, %v2129
        %v2161 = vadd.f32 %v2160, %v2130
        %v2162 = vadd.f32 %v2161, %v2131
        %v2163 = vadd.f32 %v2162, %v2132
        %v2164 = vadd.f32 %v2163, %v2133
        %v2165 = vadd.f32 %v2164, %v2134
        %v2166 = vadd.f32 %v2165, %v2135
        %v2167 = vadd.f32 %v2166, %v2136
        %v2168 = vadd.f32 %v2167, %v2137
        %v2169 = vrot.slane %v2168, 4
        %v2170 = vadd.f32 %v2168, %v2169
        %v2171 = vrot.slane %v2170, 2
        %v2172 = vadd.f32 %v2170, %v2171
        %v2173 = vrot.slane %v2172, 1
        %v2174 = vadd.f32 %v2172, %v2173
        %v2175 = vadd.f32 %v2002, %v2174
        %v2176 = vpack.c.bf16 %v1555, %v1555
        %v2177 = vpack.c.bf16 %v1557, %v1557
        %v2178 = vpack.c.bf16 %v1560, %v1560
        %v2179 = vpack.c.bf16 %v1562, %v1562
        %v2180 = vpack.c.bf16 %v1565, %v1565
        %v2181 = vpack.c.bf16 %v1567, %v1567
        %v2182 = vpack.c.bf16 %v1570, %v1570
        %v2183 = vpack.c.bf16 %v1572, %v1572
        %v2184 = vpack.c.bf16 %v1575, %v1575
        %v2185 = vpack.c.bf16 %v1577, %v1577
        %v2186 = vpack.c.bf16 %v1580, %v1580
        %v2187 = vpack.c.bf16 %v1582, %v1582
        %v2188 = vpack.c.bf16 %v1585, %v1585
        %v2189 = vpack.c.bf16 %v1587, %v1587
        %v2190 = vpack.c.bf16 %v1590, %v1590
        %v2191 = vpack.c.bf16 %v1592, %v1592
        %v2192 = vpack.c.bf16 %v1595, %v1595
        %v2193 = vpack.c.bf16 %v1597, %v1597
        %v2194 = vpack.c.bf16 %v1600, %v1600
        %v2195 = vpack.c.bf16 %v1602, %v1602
        %v2196 = vpack.c.bf16 %v1605, %v1605
        %v2197 = vpack.c.bf16 %v1607, %v1607
        %v2198 = vpack.c.bf16 %v1610, %v1610
        %v2199 = vpack.c.bf16 %v1612, %v1612
        %v2200 = vpack.c.bf16 %v1615, %v1615
        %v2201 = vpack.c.bf16 %v1617, %v1617
        %v2202 = vpack.c.bf16 %v1620, %v1620
        %v2203 = vpack.c.bf16 %v1622, %v1622
        %v2204 = vpack.c.bf16 %v1625, %v1625
        %v2205 = vpack.c.bf16 %v1627, %v1627
        %v2206 = vpack.c.bf16 %v1630, %v1630
        %v2207 = vpack.c.bf16 %v1632, %v1632
        %s2208 = scalar_lea.vmem %s302, 256 [#allocation2]
        %2209 = vst [vmem:[%s2208] sm:$0xf] %v2176
        %2210 = vst [vmem:[%s2208 + $0x4] sm:$0xf] %v2177
        %2211 = vst [vmem:[%s2208 + $0x8] sm:$0xf] %v2178
        %2212 = vst [vmem:[%s2208 + $0xc] sm:$0xf] %v2179
        %2213 = vst [vmem:[%s2208 + $0x10] sm:$0xf] %v2180
        %2214 = vst [vmem:[%s2208 + $0x14] sm:$0xf] %v2181
        %2215 = vst [vmem:[%s2208 + $0x18] sm:$0xf] %v2182
        %2216 = vst [vmem:[%s2208 + $0x1c] sm:$0xf] %v2183
        %2217 = vst [vmem:[%s2208 + $0x20] sm:$0xf] %v2184
        %2218 = vst [vmem:[%s2208 + $0x24] sm:$0xf] %v2185
        %2219 = vst [vmem:[%s2208 + $0x28] sm:$0xf] %v2186
        %2220 = vst [vmem:[%s2208 + $0x2c] sm:$0xf] %v2187
        %2221 = vst [vmem:[%s2208 + $0x30] sm:$0xf] %v2188
        %2222 = vst [vmem:[%s2208 + $0x34] sm:$0xf] %v2189
        %2223 = vst [vmem:[%s2208 + $0x38] sm:$0xf] %v2190
        %2224 = vst [vmem:[%s2208 + $0x3c] sm:$0xf] %v2191
        %2225 = vst [vmem:[%s2208 + $0x40] sm:$0xf] %v2192
        %2226 = vst [vmem:[%s2208 + $0x44] sm:$0xf] %v2193
        %2227 = vst [vmem:[%s2208 + $0x48] sm:$0xf] %v2194
        %2228 = vst [vmem:[%s2208 + $0x4c] sm:$0xf] %v2195
        %2229 = vst [vmem:[%s2208 + $0x50] sm:$0xf] %v2196
        %2230 = vst [vmem:[%s2208 + $0x54] sm:$0xf] %v2197
        %2231 = vst [vmem:[%s2208 + $0x58] sm:$0xf] %v2198
        %2232 = vst [vmem:[%s2208 + $0x5c] sm:$0xf] %v2199
        %2233 = vst [vmem:[%s2208 + $0x60] sm:$0xf] %v2200
        %2234 = vst [vmem:[%s2208 + $0x64] sm:$0xf] %v2201
        %2235 = vst [vmem:[%s2208 + $0x68] sm:$0xf] %v2202
        %2236 = vst [vmem:[%s2208 + $0x6c] sm:$0xf] %v2203
        %2237 = vst [vmem:[%s2208 + $0x70] sm:$0xf] %v2204
        %2238 = vst [vmem:[%s2208 + $0x74] sm:$0xf] %v2205
        %2239 = vst [vmem:[%s2208 + $0x78] sm:$0xf] %v2206
        %2240 = vst [vmem:[%s2208 + $0x7c] sm:$0xf] %v2207
        %v2241 = vadd.f32 %v1644, %v1646
        %v2242 = vadd.f32 %v2241, %v1649
        %v2243 = vadd.f32 %v2242, %v1651
        %v2244 = vadd.f32 %v2243, %v1654
        %v2245 = vadd.f32 %v2244, %v1656
        %v2246 = vadd.f32 %v2245, %v1659
        %v2247 = vadd.f32 %v2246, %v1661
        %v2248 = vadd.f32 %v2247, %v1664
        %v2249 = vadd.f32 %v2248, %v1666
        %v2250 = vadd.f32 %v2249, %v1669
        %v2251 = vadd.f32 %v2250, %v1671
        %v2252 = vadd.f32 %v2251, %v1674
        %v2253 = vadd.f32 %v2252, %v1676
        %v2254 = vadd.f32 %v2253, %v1679
        %v2255 = vadd.f32 %v2254, %v1681
        %v2256 = vadd.f32 %v2255, %v1684
        %v2257 = vadd.f32 %v2256, %v1686
        %v2258 = vadd.f32 %v2257, %v1689
        %v2259 = vadd.f32 %v2258, %v1691
        %v2260 = vadd.f32 %v2259, %v1694
        %v2261 = vadd.f32 %v2260, %v1696
        %v2262 = vadd.f32 %v2261, %v1699
        %v2263 = vadd.f32 %v2262, %v1701
        %v2264 = vadd.f32 %v2263, %v1704
        %v2265 = vadd.f32 %v2264, %v1706
        %v2266 = vadd.f32 %v2265, %v1709
        %v2267 = vadd.f32 %v2266, %v1711
        %v2268 = vadd.f32 %v2267, %v1714
        %v2269 = vadd.f32 %v2268, %v1716
        %v2270 = vadd.f32 %v2269, %v1719
        %v2271 = vadd.f32 %v2270, %v1721
        %v2272 = vrot.slane %v2271, 4
        %v2273 = vadd.f32 %v2271, %v2272
        %v2274 = vrot.slane %v2273, 2
        %v2275 = vadd.f32 %v2273, %v2274
        %v2276 = vrot.slane %v2275, 1
        %v2277 = vadd.f32 %v2275, %v2276
        %v2278 = vadd.f32 %v2105, %v2277
        %v2279 = vmul.f32 %v1644, %v1644
        %v2280 = vmul.f32 %v1646, %v1646
        %v2281 = vmul.f32 %v1649, %v1649
        %v2282 = vmul.f32 %v1651, %v1651
        %v2283 = vmul.f32 %v1654, %v1654
        %v2284 = vmul.f32 %v1656, %v1656
        %v2285 = vmul.f32 %v1659, %v1659
        %v2286 = vmul.f32 %v1661, %v1661
        %v2287 = vmul.f32 %v1664, %v1664
        %v2288 = vmul.f32 %v1666, %v1666
        %v2289 = vmul.f32 %v1669, %v1669
        %v2290 = vmul.f32 %v1671, %v1671
        %v2291 = vmul.f32 %v1674, %v1674
        %v2292 = vmul.f32 %v1676, %v1676
        %v2293 = vmul.f32 %v1679, %v1679
        %v2294 = vmul.f32 %v1681, %v1681
        %v2295 = vmul.f32 %v1684, %v1684
        %v2296 = vmul.f32 %v1686, %v1686
        %v2297 = vmul.f32 %v1689, %v1689
        %v2298 = vmul.f32 %v1691, %v1691
        %v2299 = vmul.f32 %v1694, %v1694
        %v2300 = vmul.f32 %v1696, %v1696
        %v2301 = vmul.f32 %v1699, %v1699
        %v2302 = vmul.f32 %v1701, %v1701
        %v2303 = vmul.f32 %v1704, %v1704
        %v2304 = vmul.f32 %v1706, %v1706
        %v2305 = vmul.f32 %v1709, %v1709
        %v2306 = vmul.f32 %v1711, %v1711
        %v2307 = vmul.f32 %v1714, %v1714
        %v2308 = vmul.f32 %v1716, %v1716
        %v2309 = vmul.f32 %v1719, %v1719
        %v2310 = vmul.f32 %v1721, %v1721
        %v2311 = vadd.f32 %v2279, %v2280
        %v2312 = vadd.f32 %v2311, %v2281
        %v2313 = vadd.f32 %v2312, %v2282
        %v2314 = vadd.f32 %v2313, %v2283
        %v2315 = vadd.f32 %v2314, %v2284
        %v2316 = vadd.f32 %v2315, %v2285
        %v2317 = vadd.f32 %v2316, %v2286
        %v2318 = vadd.f32 %v2317, %v2287
        %v2319 = vadd.f32 %v2318, %v2288
        %v2320 = vadd.f32 %v2319, %v2289
        %v2321 = vadd.f32 %v2320, %v2290
        %v2322 = vadd.f32 %v2321, %v2291
        %v2323 = vadd.f32 %v2322, %v2292
        %v2324 = vadd.f32 %v2323, %v2293
        %v2325 = vadd.f32 %v2324, %v2294
        %v2326 = vadd.f32 %v2325, %v2295
        %v2327 = vadd.f32 %v2326, %v2296
        %v2328 = vadd.f32 %v2327, %v2297
        %v2329 = vadd.f32 %v2328, %v2298
        %v2330 = vadd.f32 %v2329, %v2299
        %v2331 = vadd.f32 %v2330, %v2300
        %v2332 = vadd.f32 %v2331, %v2301
        %v2333 = vadd.f32 %v2332, %v2302
        %v2334 = vadd.f32 %v2333, %v2303
        %v2335 = vadd.f32 %v2334, %v2304
        %v2336 = vadd.f32 %v2335, %v2305
        %v2337 = vadd.f32 %v2336, %v2306
        %v2338 = vadd.f32 %v2337, %v2307
        %v2339 = vadd.f32 %v2338, %v2308
        %v2340 = vadd.f32 %v2339, %v2309
        %v2341 = vadd.f32 %v2340, %v2310
        %v2342 = vrot.slane %v2341, 4
        %v2343 = vadd.f32 %v2341, %v2342
        %v2344 = vrot.slane %v2343, 2
        %v2345 = vadd.f32 %v2343, %v2344
        %v2346 = vrot.slane %v2345, 1
        %v2347 = vadd.f32 %v2345, %v2346
        %v2348 = vadd.f32 %v2175, %v2347
        %v2349 = vpack.c.bf16 %v1644, %v1644
        %v2350 = vpack.c.bf16 %v1646, %v1646
        %v2351 = vpack.c.bf16 %v1649, %v1649
        %v2352 = vpack.c.bf16 %v1651, %v1651
        %v2353 = vpack.c.bf16 %v1654, %v1654
        %v2354 = vpack.c.bf16 %v1656, %v1656
        %v2355 = vpack.c.bf16 %v1659, %v1659
        %v2356 = vpack.c.bf16 %v1661, %v1661
        %v2357 = vpack.c.bf16 %v1664, %v1664
        %v2358 = vpack.c.bf16 %v1666, %v1666
        %v2359 = vpack.c.bf16 %v1669, %v1669
        %v2360 = vpack.c.bf16 %v1671, %v1671
        %v2361 = vpack.c.bf16 %v1674, %v1674
        %v2362 = vpack.c.bf16 %v1676, %v1676
        %v2363 = vpack.c.bf16 %v1679, %v1679
        %v2364 = vpack.c.bf16 %v1681, %v1681
        %v2365 = vpack.c.bf16 %v1684, %v1684
        %v2366 = vpack.c.bf16 %v1686, %v1686
        %v2367 = vpack.c.bf16 %v1689, %v1689
        %v2368 = vpack.c.bf16 %v1691, %v1691
        %v2369 = vpack.c.bf16 %v1694, %v1694
        %v2370 = vpack.c.bf16 %v1696, %v1696
        %v2371 = vpack.c.bf16 %v1699, %v1699
        %v2372 = vpack.c.bf16 %v1701, %v1701
        %v2373 = vpack.c.bf16 %v1704, %v1704
        %v2374 = vpack.c.bf16 %v1706, %v1706
        %v2375 = vpack.c.bf16 %v1709, %v1709
        %v2376 = vpack.c.bf16 %v1711, %v1711
        %v2377 = vpack.c.bf16 %v1714, %v1714
        %v2378 = vpack.c.bf16 %v1716, %v1716
        %v2379 = vpack.c.bf16 %v1719, %v1719
        %v2380 = vpack.c.bf16 %v1721, %v1721
        %s2381 = scalar_lea.vmem %s302, 384 [#allocation2]
        %2382 = vst [vmem:[%s2381] sm:$0xf] %v2349
        %2383 = vst [vmem:[%s2381 + $0x4] sm:$0xf] %v2350
        %2384 = vst [vmem:[%s2381 + $0x8] sm:$0xf] %v2351
        %2385 = vst [vmem:[%s2381 + $0xc] sm:$0xf] %v2352
        %2386 = vst [vmem:[%s2381 + $0x10] sm:$0xf] %v2353
        %2387 = vst [vmem:[%s2381 + $0x14] sm:$0xf] %v2354
        %2388 = vst [vmem:[%s2381 + $0x18] sm:$0xf] %v2355
        %2389 = vst [vmem:[%s2381 + $0x1c] sm:$0xf] %v2356
        %2390 = vst [vmem:[%s2381 + $0x20] sm:$0xf] %v2357
        %2391 = vst [vmem:[%s2381 + $0x24] sm:$0xf] %v2358
        %2392 = vst [vmem:[%s2381 + $0x28] sm:$0xf] %v2359
        %2393 = vst [vmem:[%s2381 + $0x2c] sm:$0xf] %v2360
        %2394 = vst [vmem:[%s2381 + $0x30] sm:$0xf] %v2361
        %2395 = vst [vmem:[%s2381 + $0x34] sm:$0xf] %v2362
        %2396 = vst [vmem:[%s2381 + $0x38] sm:$0xf] %v2363
        %2397 = vst [vmem:[%s2381 + $0x3c] sm:$0xf] %v2364
        %2398 = vst [vmem:[%s2381 + $0x40] sm:$0xf] %v2365
        %2399 = vst [vmem:[%s2381 + $0x44] sm:$0xf] %v2366
        %2400 = vst [vmem:[%s2381 + $0x48] sm:$0xf] %v2367
        %2401 = vst [vmem:[%s2381 + $0x4c] sm:$0xf] %v2368
        %2402 = vst [vmem:[%s2381 + $0x50] sm:$0xf] %v2369
        %2403 = vst [vmem:[%s2381 + $0x54] sm:$0xf] %v2370
        %2404 = vst [vmem:[%s2381 + $0x58] sm:$0xf] %v2371
        %2405 = vst [vmem:[%s2381 + $0x5c] sm:$0xf] %v2372
        %2406 = vst [vmem:[%s2381 + $0x60] sm:$0xf] %v2373
        %2407 = vst [vmem:[%s2381 + $0x64] sm:$0xf] %v2374
        %2408 = vst [vmem:[%s2381 + $0x68] sm:$0xf] %v2375
        %2409 = vst [vmem:[%s2381 + $0x6c] sm:$0xf] %v2376
        %2410 = vst [vmem:[%s2381 + $0x70] sm:$0xf] %v2377
        %2411 = vst [vmem:[%s2381 + $0x74] sm:$0xf] %v2378
        %2412 = vst [vmem:[%s2381 + $0x78] sm:$0xf] %v2379
        %2413 = vst [vmem:[%s2381 + $0x7c] sm:$0xf] %v2380
        %2414 = vst [vmem:[%s308] sm:$0x1] %v2278
        %2415 = vst [vmem:[%s314] sm:$0x1] %v2348
        %s2416 = sand.u32 %s126, 1
        %s2417 = scalar_lea.sflag [#allocation3], %s2416
        %s2418 = sand.u32 %s126, 1
        %s2419 = smul.addr %s2418, 512
        %s2420 = scalar_lea.vmem [#allocation2], %s2419
        %s2421 = sand.u32 %s23, 1
        %s2422 = scalar_lea.sflag [#allocation5], %s2421
        %s2423 = sand.u32 %s154, 1
        %s2424 = scalar_lea.vmem [#allocation4], %s2423
        %s2425 = sand.u32 %s23, 1
        %s2426 = scalar_lea.sflag [#allocation5], %s2425
        %s2427 = sand.u32 %s182, 1
        %s2428 = scalar_lea.vmem [#allocation6], %s2427
        // Predicated region
        $region33: #{tpu_custom_call.1} parent=31 // pred_check
          %p2429 = pneg %p136
        $region34: #{tpu_custom_call.1} parent=31 // pred_check_branch
          %2431 = sbr.rel (%p2429) target = $region36
        $region35: #{tpu_custom_call.1} parent=31 // pred_region
          %s2432 = smul.u32 16, %s28
          %2434 = vsyncadd %s2417, 0
          %s2435 = smul.addr %s2432, 2
          %s2436 = smul.addr %s27, 128
          %s2437 = sadd.s32 %s2435, %s2436
          %s2438 = smul.addr %s2437, 4
          %s2439 = scalar_lea.hbm %s3, %s2438
          %s2440 = sshll.u32 %s2420, 4
          %s2441 = int_to_ptr.vmem [resolvable:$true] %s2440
          %s2442 = sshll.u32 %s2439, 4
          %s2443 = int_to_ptr.hbm [resolvable:$true] %s2442
          %2448 = dma.vmem_to_hbm [thread:$0]  %s2441, 8192, %s2443, %s2417, 64, 64, 4
        $region36: #{tpu_custom_call.1} parent=31 // pred_fallthru
          _
        // Predicated region
        $region37: #{tpu_custom_call.1} parent=31 // pred_check
          %p2449 = pneg %p164
        $region38: #{tpu_custom_call.1} parent=31 // pred_check_branch
          %2451 = sbr.rel (%p2449) target = $region40
        $region39: #{tpu_custom_call.1} parent=31 // pred_region
          %2453 = vsyncadd %s2422, 0
          %s2454 = sadd.s32 %s28, %s27
          %s2455 = scalar_lea.hbm %s4, %s2454
          %s2457 = sshll.u32 %s2424, 4
          %s2458 = int_to_ptr.vmem [resolvable:$true] %s2457
          %s2459 = sshll.u32 %s2455, 4
          %s2460 = int_to_ptr.hbm [resolvable:$true] %s2459
          %2462 = dma.vmem_to_hbm [thread:$0]  %s2458, 16, %s2460, %s2422
        $region40: #{tpu_custom_call.1} parent=31 // pred_fallthru
          _
        // Predicated region
        $region41: #{tpu_custom_call.1} parent=31 // pred_check
          %p2463 = pneg %p192
        $region42: #{tpu_custom_call.1} parent=31 // pred_check_branch
          %2465 = sbr.rel (%p2463) target = $region44
        $region43: #{tpu_custom_call.1} parent=31 // pred_region
          %2467 = vsyncadd %s2426, 0
          %s2468 = sadd.s32 %s28, %s27
          %s2469 = scalar_lea.hbm %s5, %s2468
          %s2471 = sshll.u32 %s2428, 4
          %s2472 = int_to_ptr.vmem [resolvable:$true] %s2471
          %s2473 = sshll.u32 %s2469, 4
          %s2474 = int_to_ptr.hbm [resolvable:$true] %s2473
          %2476 = dma.vmem_to_hbm [thread:$0]  %s2472, 16, %s2474, %s2426
        $region44: #{tpu_custom_call.1} parent=31 // pred_fallthru
          _
      $region32: #{tpu_custom_call.1} parent=5 // pred_fallthru
        _
      %p2477 = scmp.le.s32.totalorder 2, %s18
      // Predicated region
      $region45: #{tpu_custom_call.1} parent=5 // pred_check
        %p2478 = pneg %p2477
      $region46: #{tpu_custom_call.1} parent=5 // pred_check_branch
        %2480 = sbr.rel (%p2478) target = $region48
      $region47: #{tpu_custom_call.1} parent=5 // pred_region
        %s2481 = ssub.s32 %s18, 2
        // Predicated region
        $region49: #{tpu_custom_call.1} parent=47 // pred_check
          %p2482 = pneg %p142
        $region50: #{tpu_custom_call.1} parent=47 // pred_check_branch
          %2484 = sbr.rel (%p2482) target = $region52
        $region51: #{tpu_custom_call.1} parent=47 // pred_region
          %s2485 = sand.u32 %s127, 1
          %s2486 = scalar_lea.sflag [#allocation3], %s2485
          %s2487 = sand.u32 %s127, 1
          %s2488 = smul.addr %s2487, 512
          %s2489 = scalar_lea.vmem [#allocation2], %s2488
          %2491 = dma.done %s2486, 8192
        $region52: #{tpu_custom_call.1} parent=47 // pred_fallthru
          _
        // Predicated region
        $region53: #{tpu_custom_call.1} parent=47 // pred_check
          %p2492 = pneg %p170
        $region54: #{tpu_custom_call.1} parent=47 // pred_check_branch
          %2494 = sbr.rel (%p2492) target = $region56
        $region55: #{tpu_custom_call.1} parent=47 // pred_region
          %s2495 = sand.u32 %s24, 1
          %s2496 = scalar_lea.sflag [#allocation5], %s2495
          %s2497 = sand.u32 %s155, 1
          %s2498 = scalar_lea.vmem [#allocation4], %s2497
          %2500 = dma.done %s2496, 16
        $region56: #{tpu_custom_call.1} parent=47 // pred_fallthru
          _
        // Predicated region
        $region57: #{tpu_custom_call.1} parent=47 // pred_check
          %p2501 = pneg %p198
        $region58: #{tpu_custom_call.1} parent=47 // pred_check_branch
          %2503 = sbr.rel (%p2501) target = $region60
        $region59: #{tpu_custom_call.1} parent=47 // pred_region
          %s2504 = sand.u32 %s24, 1
          %s2505 = scalar_lea.sflag [#allocation5], %s2504
          %s2506 = sand.u32 %s183, 1
          %s2507 = scalar_lea.vmem [#allocation6], %s2506
          %2509 = dma.done %s2505, 16
        $region60: #{tpu_custom_call.1} parent=47 // pred_fallthru
          _
      $region48: #{tpu_custom_call.1} parent=5 // pred_fallthru
        _
    $region6: #{tpu_custom_call.1} parent=1 // loop_footer
      %s22 = sadd.s32 1, %s18
    $region7: #{tpu_custom_call.1} parent=1 // loop_footer_branch
      %17 = sbr.rel target = $region3
    $region8: #{tpu_custom_call.1} parent=1 // loop_exit
      _
    %2510 = vsyncpa [#allocation3], 1
    %s2511 = scalar_lea.sflag [#allocation3], 1
    %2512 = vsyncpa %s2511, 1
    %2513 = vsyncpa [#allocation5], 1
    %s2514 = scalar_lea.sflag [#allocation5], 1
    %2515 = vsyncpa %s2514, 1

</llo_original>
